<compile_context>
chip_gen: v7x
topology: tpu7x:2x2x1
jax: 0.10.0
libtpu: 0.0.40
codegen_flags: <defaults>
</compile_context>

<pallas_src>
import jax
import jax.numpy as jnp
import numpy as np
from jax import lax
from jax.experimental import pallas as pl
from jax.experimental.pallas import tpu as pltpu


def _vmem():
    # Whole-array (untiled) block resident in VMEM -- shapes here are tiny.
    return pl.BlockSpec(memory_space=pltpu.MemorySpace.VMEM)


# ---------------------------------------------------------------------------
# Single fused kernel for the whole forward pass.
# ---------------------------------------------------------------------------
def make_fused_kernel(num_layers, num_graphs, hidden_dim):
    H = hidden_dim
    bf16 = jnp.bfloat16
    f32 = jnp.float32

    def kernel(*refs):
        # Ref layout (PrefetchScalarGridSpec ordering):
        #   [0]            idx_ref  (SMEM, scalar-prefetched gather indices)
        #   [1]            a_ref    bf16 [N, N] normalized adjacency (resident)
        #   [2]            x_ref    bf16 [N, D] node embeddings
        #   next 2L        (w_l bf16, b_l f32) per GCN layer
        #   next 2         gamma, beta  (shared LayerNorm, f32 [1, H])
        #   next 2         wqkv bf16 [H, 3H], bqkv f32 [1, 3H] (scale folded in)
        #   next 6         w1, b1, w2, b2, w3t, b3   (MLP head; w3t = W3^T)
        #   [-2]           o_ref    f32 [1, M] lane-dense output
        #   [-1]           att_scratch  VMEM f32 [N, H]
        idx_ref = refs[0]
        a_ref = refs[1]
        x_ref = refs[2]
        pos = 3
        gcn_refs = refs[pos:pos + 2 * num_layers]
        pos += 2 * num_layers
        g_ref, beta_ref = refs[pos], refs[pos + 1]
        pos += 2
        wqkv_ref, bqkv_ref = refs[pos], refs[pos + 1]
        pos += 2
        w1_ref, b1_ref, w2_ref, b2_ref, w3t_ref, b3_ref = refs[pos:pos + 6]
        pos += 6
        o_ref = refs[pos]
        att_scratch = refs[pos + 1]

        a = a_ref[...]            # [N, N] bf16, loaded once for all layers
        x = x_ref[...]            # [N, D] bf16
        gamma = g_ref[...]        # [1, H] f32 (hoisted broadcasts)
        beta = beta_ref[...]

        # ---- stacked GCNConv -> shared LayerNorm -> ReLU (fused) ----------
        for l in range(num_layers):
            w = gcn_refs[2 * l][...]          # bf16 [Din, H]
            b = gcn_refs[2 * l + 1][...]      # f32  [1, H]
            xw = jnp.dot(x, w, preferred_element_type=f32)              # MXU
            h = jnp.dot(a, xw.astype(bf16), preferred_element_type=f32) + b
            mu = jnp.mean(h, axis=-1, keepdims=True)
            var = jnp.mean((h - mu) ** 2, axis=-1, keepdims=True)
            hn = (h - mu) * lax.rsqrt(var + 1e-5)
            x = jnp.maximum(hn * gamma + beta, 0.0).astype(bf16)

        # ---- self-attention (fused QKV; 1/sqrt(H) already folded into Wq) -
        qkv = jnp.dot(x, wqkv_ref[...], preferred_element_type=f32) + bqkv_ref[...]
        q = qkv[:, :H]
        k = qkv[:, H:2 * H]
        v = qkv[:, 2 * H:]
        # q @ k^T without materializing a transposed copy of k
        s = lax.dot_general(q.astype(bf16), k.astype(bf16),
                            (((1,), (1,)), ((), ())),
                            preferred_element_type=f32)                 # [N, N]
        m = jnp.max(s, axis=-1, keepdims=True)
        p = jnp.exp(s - m)
        inv = pl.reciprocal(jnp.sum(p, axis=-1, keepdims=True), approx=True)
        attn = p * inv
        att = jnp.dot(attn.astype(bf16), v.astype(bf16),
                      preferred_element_type=f32)                       # [N, H]
        att_scratch[...] = att

        # ---- x[idx]: row gather via scalar-prefetched indices in SMEM ------
        x_sel = jnp.concatenate(
            [att_scratch[pl.ds(idx_ref[i], 1), :] for i in range(num_graphs)],
            axis=0).astype(bf16)                                        # [M, H]

        # ---- MLP head (dropouts are identity in eval) ----------------------
        h1 = jnp.maximum(
            jnp.dot(x_sel, w1_ref[...], preferred_element_type=f32)
            + b1_ref[...], 0.0)                                          # [M, H]
        h2 = jnp.maximum(
            jnp.dot(h1.astype(bf16), w2_ref[...], preferred_element_type=f32)
            + b2_ref[...], 0.0)                                          # [M, 64]
        # lane-dense final layer: (1, 64) x (M, 64)^T contraction -> (1, M)
        z = lax.dot_general(w3t_ref[...], h2.astype(bf16),
                            (((1,), (1,)), ((), ())),
                            preferred_element_type=f32)                  # [1, M]
        o_ref[...] = jax.nn.sigmoid(z + b3_ref[...])

    return kernel


# ---------------------------------------------------------------------------
# Glue: dense normalized adjacency (GCNConv semantics, symmetric normalization)
# ---------------------------------------------------------------------------
def build_gcn_adjacency(edge_index, num_nodes):
    src = edge_index[0]
    tgt = edge_index[1]
    a = jnp.zeros((num_nodes, num_nodes), jnp.float32)
    a = a.at[tgt, src].add(1.0)                         # A[i, j] = 1 for edge j -> i
    a = a + jnp.eye(num_nodes, dtype=jnp.float32)       # add self-loops
    deg = jnp.sum(a, axis=1)                            # in-degree (with self-loops)
    dinv = jax.lax.rsqrt(jnp.maximum(deg, 1e-12))
    return a * dinv[:, None] * dinv[None, :]            # D^{-1/2} (A+I) D^{-1/2}


# ---------------------------------------------------------------------------
# Full forward: GNNTrans.forward  (single fused pallas_call)
# ---------------------------------------------------------------------------
def gnn_trans_forward(params, emb, edge_index, ptr, seq_half):
    n = emb.shape[0]
    num_graphs = int(ptr.shape[0]) - 1
    num_layers = len(params["gcn"])
    hidden_dim = params["ln_gamma"].shape[0]

    bf16 = jnp.bfloat16
    f32 = jnp.float32

    a_hat = build_gcn_adjacency(edge_index, n).astype(bf16)
    idx = (ptr[:-1] + seq_half).astype(jnp.int32)

    # Fold the 1/sqrt(hidden) attention scale into Wq / bq; fuse QKV weights.
    inv_sqrt = jnp.float32(1.0 / np.sqrt(hidden_dim))
    wqkv = jnp.concatenate(
        [params["wq"] * inv_sqrt, params["wk"], params["wv"]], axis=1).astype(bf16)
    bqkv = jnp.concatenate(
        [params["bq"] * inv_sqrt, params["bk"], params["bv"]]
    ).reshape(1, -1).astype(f32)

    ops = [a_hat, emb.astype(bf16)]
    for (w, b) in params["gcn"]:
        ops += [w.astype(bf16), b.reshape(1, -1).astype(f32)]
    ops += [params["ln_gamma"].reshape(1, -1).astype(f32),
            params["ln_beta"].reshape(1, -1).astype(f32)]
    ops += [wqkv, bqkv]
    ops += [params["w1"].astype(bf16), params["b1"].reshape(1, -1).astype(f32),
            params["w2"].astype(bf16), params["b2"].reshape(1, -1).astype(f32),
            params["w3"].T.astype(bf16), params["b3"].reshape(1, 1).astype(f32)]

    kern = make_fused_kernel(num_layers, num_graphs, hidden_dim)
    out_row = pl.pallas_call(
        kern,
        out_shape=jax.ShapeDtypeStruct((1, num_graphs), jnp.float32),
        grid_spec=pltpu.PrefetchScalarGridSpec(
            num_scalar_prefetch=1,
            grid=(1,),
            in_specs=[_vmem()] * len(ops),
            out_specs=_vmem(),
            scratch_shapes=[pltpu.VMEM((n, hidden_dim), jnp.float32)],
        ),
        compiler_params=pltpu.CompilerParams(
            dimension_semantics=("arbitrary",)),
    )(idx, *ops)

    # Match PyTorch output shape (num_graphs, 1); transpose of (1, M) is free glue.
    return out_row.T


# ---------------------------------------------------------------------------
# Deterministic parameter init
# ---------------------------------------------------------------------------
def init_params(key, input_dim, hidden_dim, num_layers):
    keys = jax.random.split(key, 16)
    ki = iter(keys)

    def lin(k, din, dout):
        scale = 1.0 / np.sqrt(din)
        kw, kb = jax.random.split(k)
        w = jax.random.uniform(kw, (din, dout), jnp.float32, -scale, scale)
        b = jax.random.uniform(kb, (dout,), jnp.float32, -scale, scale)
        return w, b

    gcn = []
    din = input_dim
    for _ in range(num_layers):
        gcn.append(lin(next(ki), din, hidden_dim))
        din = hidden_dim

    wq, bq = lin(next(ki), hidden_dim, hidden_dim)
    wk, bk = lin(next(ki), hidden_dim, hidden_dim)
    wv, bv = lin(next(ki), hidden_dim, hidden_dim)
    w1, b1 = lin(next(ki), hidden_dim, hidden_dim)
    w2, b2 = lin(next(ki), hidden_dim, 64)
    w3, b3 = lin(next(ki), 64, 1)

    return dict(
        gcn=gcn,
        ln_gamma=jnp.ones((hidden_dim,), jnp.float32),
        ln_beta=jnp.zeros((hidden_dim,), jnp.float32),
        wq=wq, bq=bq, wk=wk, bk=bk, wv=wv, bv=bv,
        w1=w1, b1=b1, w2=w2, b2=b2, w3=w3, b3=b3,
    )


if __name__ == "__main__":
    # Small shapes: 4 graphs x 8 nodes = 32 nodes, emb dim 32, hidden 32, 2 layers.
    num_graphs = 4
    nodes_per_graph = 8
    n_nodes = num_graphs * nodes_per_graph
    input_dim = 32
    hidden_dim = 32
    num_layers = 2
    seq_half = 4  # int(len(seq[0]) / 2)

    key = jax.random.PRNGKey(0)
    k_emb, k_par = jax.random.split(key)

    emb = jax.random.normal(k_emb, (n_nodes, input_dim), jnp.float32)

    # deterministic ring edges inside each graph (both directions, no self-loops)
    src, tgt = [], []
    for g in range(num_graphs):
        base = g * nodes_per_graph
        for i in range(nodes_per_graph):
            j = (i + 1) % nodes_per_graph
            src += [base + i, base + j]
            tgt += [base + j, base + i]
    edge_index = jnp.asarray(np.stack([src, tgt]), jnp.int32)  # [2, 64]

    ptr = jnp.asarray(
        np.arange(0, n_nodes + 1, nodes_per_graph), jnp.int32)  # [num_graphs+1]

    params = init_params(k_par, input_dim, hidden_dim, num_layers)

    out = gnn_trans_forward(params, emb, edge_index, ptr, seq_half)
    out = jax.block_until_ready(out)

    assert out.shape == (num_graphs, 1), out.shape
    assert bool(jnp.all(jnp.isfinite(out)))
    assert bool(jnp.all((out > 0.0) & (out < 1.0)))  # sigmoid range
    print("KERNEL_OK")
</pallas_src>

<mosaic_0001>
module attributes {stable_mosaic.version = 11 : i64} {
  func.func @kernel(%arg0: i32, %arg1: memref<4xi32, #tpu.memory_space<smem>>, %arg2: memref<32x32xbf16, #tpu.memory_space<vmem>>, %arg3: memref<32x32xbf16, #tpu.memory_space<vmem>>, %arg4: memref<32x32xbf16, #tpu.memory_space<vmem>>, %arg5: memref<1x32xf32, #tpu.memory_space<vmem>>, %arg6: memref<32x32xbf16, #tpu.memory_space<vmem>>, %arg7: memref<1x32xf32, #tpu.memory_space<vmem>>, %arg8: memref<1x32xf32, #tpu.memory_space<vmem>>, %arg9: memref<1x32xf32, #tpu.memory_space<vmem>>, %arg10: memref<32x96xbf16, #tpu.memory_space<vmem>>, %arg11: memref<1x96xf32, #tpu.memory_space<vmem>>, %arg12: memref<32x32xbf16, #tpu.memory_space<vmem>>, %arg13: memref<1x32xf32, #tpu.memory_space<vmem>>, %arg14: memref<32x64xbf16, #tpu.memory_space<vmem>>, %arg15: memref<1x64xf32, #tpu.memory_space<vmem>>, %arg16: memref<1x64xbf16, #tpu.memory_space<vmem>>, %arg17: memref<1x1xf32, #tpu.memory_space<vmem>>, %arg18: memref<1x4xf32, #tpu.memory_space<vmem>>, %arg19: memref<32x32xf32, #tpu.memory_space<vmem>>) attributes {dimension_semantics = [#tpu.dimension_semantics<arbitrary>], iteration_bounds = array<i64: 1>, scalar_prefetch = 1 : i64, scratch_operands = 1 : i64, tpu.core_type = #tpu.core_type<tc>, window_params = [{pipeline_mode = #tpu.pipeline_mode<synchronous>, transform_indices = @transform_0, window_bounds = array<i64: 32, 32>}, {pipeline_mode = #tpu.pipeline_mode<synchronous>, transform_indices = @transform_1, window_bounds = array<i64: 32, 32>}, {pipeline_mode = #tpu.pipeline_mode<synchronous>, transform_indices = @transform_2, window_bounds = array<i64: 32, 32>}, {pipeline_mode = #tpu.pipeline_mode<synchronous>, transform_indices = @transform_3, window_bounds = array<i64: 1, 32>}, {pipeline_mode = #tpu.pipeline_mode<synchronous>, transform_indices = @transform_4, window_bounds = array<i64: 32, 32>}, {pipeline_mode = #tpu.pipeline_mode<synchronous>, transform_indices = @transform_5, window_bounds = array<i64: 1, 32>}, {pipeline_mode = #tpu.pipeline_mode<synchronous>, transform_indices = @transform_6, window_bounds = array<i64: 1, 32>}, {pipeline_mode = #tpu.pipeline_mode<synchronous>, transform_indices = @transform_7, window_bounds = array<i64: 1, 32>}, {pipeline_mode = #tpu.pipeline_mode<synchronous>, transform_indices = @transform_8, window_bounds = array<i64: 32, 96>}, {pipeline_mode = #tpu.pipeline_mode<synchronous>, transform_indices = @transform_9, window_bounds = array<i64: 1, 96>}, {pipeline_mode = #tpu.pipeline_mode<synchronous>, transform_indices = @transform_10, window_bounds = array<i64: 32, 32>}, {pipeline_mode = #tpu.pipeline_mode<synchronous>, transform_indices = @transform_11, window_bounds = array<i64: 1, 32>}, {pipeline_mode = #tpu.pipeline_mode<synchronous>, transform_indices = @transform_12, window_bounds = array<i64: 32, 64>}, {pipeline_mode = #tpu.pipeline_mode<synchronous>, transform_indices = @transform_13, window_bounds = array<i64: 1, 64>}, {pipeline_mode = #tpu.pipeline_mode<synchronous>, transform_indices = @transform_14, window_bounds = array<i64: 1, 64>}, {pipeline_mode = #tpu.pipeline_mode<synchronous>, transform_indices = @transform_15, window_bounds = array<i64: 1, 1>}, {pipeline_mode = #tpu.pipeline_mode<synchronous>, transform_indices = @transform_16, window_bounds = array<i64: 1, 4>}]} {
    %c0 = arith.constant 0 : index
    %c0_0 = arith.constant 0 : index
    %0 = vector.load %arg2[%c0, %c0_0] : memref<32x32xbf16, #tpu.memory_space<vmem>>, vector<32x32xbf16>
    %c0_1 = arith.constant 0 : index
    %c0_2 = arith.constant 0 : index
    %1 = vector.load %arg3[%c0_1, %c0_2] : memref<32x32xbf16, #tpu.memory_space<vmem>>, vector<32x32xbf16>
    %c0_3 = arith.constant 0 : index
    %c0_4 = arith.constant 0 : index
    %2 = vector.load %arg8[%c0_3, %c0_4] : memref<1x32xf32, #tpu.memory_space<vmem>>, vector<1x32xf32>
    %c0_5 = arith.constant 0 : index
    %c0_6 = arith.constant 0 : index
    %3 = vector.load %arg9[%c0_5, %c0_6] : memref<1x32xf32, #tpu.memory_space<vmem>>, vector<1x32xf32>
    %c0_7 = arith.constant 0 : index
    %c0_8 = arith.constant 0 : index
    %4 = vector.load %arg4[%c0_7, %c0_8] : memref<32x32xbf16, #tpu.memory_space<vmem>>, vector<32x32xbf16>
    %c0_9 = arith.constant 0 : index
    %c0_10 = arith.constant 0 : index
    %5 = vector.load %arg5[%c0_9, %c0_10] : memref<1x32xf32, #tpu.memory_space<vmem>>, vector<1x32xf32>
    %cst = arith.constant dense<0.000000e+00> : vector<32x32xf32>
    %6 = tpu.matmul %1, %4, %cst {dimension_numbers = #tpu.dot_dimension_numbers<[1], [0], [0], [1], [0, 0, 1, 1], [], []>} : vector<32x32xbf16>, vector<32x32xbf16>, vector<32x32xf32> -> vector<32x32xf32>
    %7 = arith.truncf %6 : vector<32x32xf32> to vector<32x32xbf16>
    %cst_11 = arith.constant dense<0.000000e+00> : vector<32x32xf32>
    %8 = tpu.matmul %0, %7, %cst_11 {dimension_numbers = #tpu.dot_dimension_numbers<[1], [0], [0], [1], [0, 0, 1, 1], [], []>} : vector<32x32xbf16>, vector<32x32xbf16>, vector<32x32xf32> -> vector<32x32xf32>
    %9 = vector.broadcast %5 : vector<1x32xf32> to vector<32x32xf32>
    %10 = arith.addf %8, %9 : vector<32x32xf32>
    %cst_12 = arith.constant dense<0.000000e+00> : vector<32xf32>
    %11 = vector.multi_reduction <add>, %10, %cst_12 [1] : vector<32x32xf32> to vector<32xf32>
    %12 = vector.shape_cast %11 : vector<32xf32> to vector<32x1xf32>
    %cst_13 = arith.constant 3.200000e+01 : f32
    %13 = vector.broadcast %cst_13 : f32 to vector<32x1xf32>
    %14 = arith.divf %12, %13 : vector<32x1xf32>
    %15 = vector.broadcast %14 : vector<32x1xf32> to vector<32x32xf32>
    %16 = arith.subf %10, %15 : vector<32x32xf32>
    %17 = arith.mulf %16, %16 : vector<32x32xf32>
    %cst_14 = arith.constant dense<0.000000e+00> : vector<32xf32>
    %18 = vector.multi_reduction <add>, %17, %cst_14 [1] : vector<32x32xf32> to vector<32xf32>
    %19 = vector.shape_cast %18 : vector<32xf32> to vector<32x1xf32>
    %cst_15 = arith.constant 3.200000e+01 : f32
    %20 = vector.broadcast %cst_15 : f32 to vector<32x1xf32>
    %21 = arith.divf %19, %20 : vector<32x1xf32>
    %22 = vector.broadcast %14 : vector<32x1xf32> to vector<32x32xf32>
    %23 = arith.subf %10, %22 : vector<32x32xf32>
    %cst_16 = arith.constant 9.99999974E-6 : f32
    %24 = vector.broadcast %cst_16 : f32 to vector<32x1xf32>
    %25 = arith.addf %21, %24 : vector<32x1xf32>
    %26 = math.rsqrt %25 : vector<32x1xf32>
    %27 = vector.broadcast %26 : vector<32x1xf32> to vector<32x32xf32>
    %28 = arith.mulf %23, %27 : vector<32x32xf32>
    %29 = vector.broadcast %2 : vector<1x32xf32> to vector<32x32xf32>
    %30 = arith.mulf %28, %29 : vector<32x32xf32>
    %31 = vector.broadcast %3 : vector<1x32xf32> to vector<32x32xf32>
    %32 = arith.addf %30, %31 : vector<32x32xf32>
    %cst_17 = arith.constant 0.000000e+00 : f32
    %33 = vector.broadcast %cst_17 : f32 to vector<32x32xf32>
    %34 = arith.maximumf %32, %33 : vector<32x32xf32>
    %35 = arith.truncf %34 : vector<32x32xf32> to vector<32x32xbf16>
    %c0_18 = arith.constant 0 : index
    %c0_19 = arith.constant 0 : index
    %36 = vector.load %arg6[%c0_18, %c0_19] : memref<32x32xbf16, #tpu.memory_space<vmem>>, vector<32x32xbf16>
    %c0_20 = arith.constant 0 : index
    %c0_21 = arith.constant 0 : index
    %37 = vector.load %arg7[%c0_20, %c0_21] : memref<1x32xf32, #tpu.memory_space<vmem>>, vector<1x32xf32>
    %cst_22 = arith.constant dense<0.000000e+00> : vector<32x32xf32>
    %38 = tpu.matmul %35, %36, %cst_22 {dimension_numbers = #tpu.dot_dimension_numbers<[1], [0], [0], [1], [0, 0, 1, 1], [], []>} : vector<32x32xbf16>, vector<32x32xbf16>, vector<32x32xf32> -> vector<32x32xf32>
    %39 = arith.truncf %38 : vector<32x32xf32> to vector<32x32xbf16>
    %cst_23 = arith.constant dense<0.000000e+00> : vector<32x32xf32>
    %40 = tpu.matmul %0, %39, %cst_23 {dimension_numbers = #tpu.dot_dimension_numbers<[1], [0], [0], [1], [0, 0, 1, 1], [], []>} : vector<32x32xbf16>, vector<32x32xbf16>, vector<32x32xf32> -> vector<32x32xf32>
    %41 = vector.broadcast %37 : vector<1x32xf32> to vector<32x32xf32>
    %42 = arith.addf %40, %41 : vector<32x32xf32>
    %cst_24 = arith.constant dense<0.000000e+00> : vector<32xf32>
    %43 = vector.multi_reduction <add>, %42, %cst_24 [1] : vector<32x32xf32> to vector<32xf32>
    %44 = vector.shape_cast %43 : vector<32xf32> to vector<32x1xf32>
    %cst_25 = arith.constant 3.200000e+01 : f32
    %45 = vector.broadcast %cst_25 : f32 to vector<32x1xf32>
    %46 = arith.divf %44, %45 : vector<32x1xf32>
    %47 = vector.broadcast %46 : vector<32x1xf32> to vector<32x32xf32>
    %48 = arith.subf %42, %47 : vector<32x32xf32>
    %49 = arith.mulf %48, %48 : vector<32x32xf32>
    %cst_26 = arith.constant dense<0.000000e+00> : vector<32xf32>
    %50 = vector.multi_reduction <add>, %49, %cst_26 [1] : vector<32x32xf32> to vector<32xf32>
    %51 = vector.shape_cast %50 : vector<32xf32> to vector<32x1xf32>
    %cst_27 = arith.constant 3.200000e+01 : f32
    %52 = vector.broadcast %cst_27 : f32 to vector<32x1xf32>
    %53 = arith.divf %51, %52 : vector<32x1xf32>
    %54 = vector.broadcast %46 : vector<32x1xf32> to vector<32x32xf32>
    %55 = arith.subf %42, %54 : vector<32x32xf32>
    %cst_28 = arith.constant 9.99999974E-6 : f32
    %56 = vector.broadcast %cst_28 : f32 to vector<32x1xf32>
    %57 = arith.addf %53, %56 : vector<32x1xf32>
    %58 = math.rsqrt %57 : vector<32x1xf32>
    %59 = vector.broadcast %58 : vector<32x1xf32> to vector<32x32xf32>
    %60 = arith.mulf %55, %59 : vector<32x32xf32>
    %61 = vector.broadcast %2 : vector<1x32xf32> to vector<32x32xf32>
    %62 = arith.mulf %60, %61 : vector<32x32xf32>
    %63 = vector.broadcast %3 : vector<1x32xf32> to vector<32x32xf32>
    %64 = arith.addf %62, %63 : vector<32x32xf32>
    %cst_29 = arith.constant 0.000000e+00 : f32
    %65 = vector.broadcast %cst_29 : f32 to vector<32x32xf32>
    %66 = arith.maximumf %64, %65 : vector<32x32xf32>
    %67 = arith.truncf %66 : vector<32x32xf32> to vector<32x32xbf16>
    %c0_30 = arith.constant 0 : index
    %c0_31 = arith.constant 0 : index
    %68 = vector.load %arg10[%c0_30, %c0_31] : memref<32x96xbf16, #tpu.memory_space<vmem>>, vector<32x96xbf16>
    %cst_32 = arith.constant dense<0.000000e+00> : vector<32x96xf32>
    %69 = tpu.matmul %67, %68, %cst_32 {dimension_numbers = #tpu.dot_dimension_numbers<[1], [0], [0], [1], [0, 0, 1, 1], [], []>} : vector<32x32xbf16>, vector<32x96xbf16>, vector<32x96xf32> -> vector<32x96xf32>
    %c0_33 = arith.constant 0 : index
    %c0_34 = arith.constant 0 : index
    %70 = vector.load %arg11[%c0_33, %c0_34] : memref<1x96xf32, #tpu.memory_space<vmem>>, vector<1x96xf32>
    %71 = vector.broadcast %70 : vector<1x96xf32> to vector<32x96xf32>
    %72 = arith.addf %69, %71 : vector<32x96xf32>
    %73 = vector.extract_strided_slice %72 {offsets = [0, 0], sizes = [32, 32], strides = [1, 1]} : vector<32x96xf32> to vector<32x32xf32>
    %74 = vector.extract_strided_slice %72 {offsets = [0, 32], sizes = [32, 32], strides = [1, 1]} : vector<32x96xf32> to vector<32x32xf32>
    %75 = vector.extract_strided_slice %72 {offsets = [0, 64], sizes = [32, 32], strides = [1, 1]} : vector<32x96xf32> to vector<32x32xf32>
    %76 = arith.truncf %73 : vector<32x32xf32> to vector<32x32xbf16>
    %77 = arith.truncf %74 : vector<32x32xf32> to vector<32x32xbf16>
    %cst_35 = arith.constant dense<0.000000e+00> : vector<32x32xf32>
    %78 = tpu.matmul %76, %77, %cst_35 {dimension_numbers = #tpu.dot_dimension_numbers<[1], [1], [0], [0], [0, 0, 1, 0], [], []>} : vector<32x32xbf16>, vector<32x32xbf16>, vector<32x32xf32> -> vector<32x32xf32>
    %cst_36 = arith.constant dense<0xFF800000> : vector<32xf32>
    %79 = vector.multi_reduction <maximumf>, %78, %cst_36 [1] : vector<32x32xf32> to vector<32xf32>
    %80 = vector.shape_cast %79 : vector<32xf32> to vector<32x1xf32>
    %81 = vector.broadcast %80 : vector<32x1xf32> to vector<32x32xf32>
    %82 = arith.subf %78, %81 : vector<32x32xf32>
    %83 = math.exp %82 : vector<32x32xf32>
    %cst_37 = arith.constant dense<0.000000e+00> : vector<32xf32>
    %84 = vector.multi_reduction <add>, %83, %cst_37 [1] : vector<32x32xf32> to vector<32xf32>
    %85 = vector.shape_cast %84 : vector<32xf32> to vector<32x1xf32>
    %86 = tpu.reciprocal %85 {approx = true} : vector<32x1xf32> -> vector<32x1xf32>
    %87 = vector.broadcast %86 : vector<32x1xf32> to vector<32x32xf32>
    %88 = arith.mulf %83, %87 : vector<32x32xf32>
    %89 = arith.truncf %88 : vector<32x32xf32> to vector<32x32xbf16>
    %90 = arith.truncf %75 : vector<32x32xf32> to vector<32x32xbf16>
    %cst_38 = arith.constant dense<0.000000e+00> : vector<32x32xf32>
    %91 = tpu.matmul %89, %90, %cst_38 {dimension_numbers = #tpu.dot_dimension_numbers<[1], [0], [0], [1], [0, 0, 1, 1], [], []>} : vector<32x32xbf16>, vector<32x32xbf16>, vector<32x32xf32> -> vector<32x32xf32>
    %c0_39 = arith.constant 0 : index
    %c0_40 = arith.constant 0 : index
    %92 = vector.load %arg19[%c0_39, %c0_40] : memref<32x32xf32, #tpu.memory_space<vmem>>, vector<32x32xf32>
    tpu.vector_store %arg19[%c0_39, %c0_40], %91 {strides = array<i32>} : memref<32x32xf32, #tpu.memory_space<vmem>>, vector<32x32xf32>,
    %c0_41 = arith.constant 0 : index
    %93 = memref.load %arg1[%c0_41] : memref<4xi32, #tpu.memory_space<smem>>
    %94 = arith.index_cast %93 : i32 to index
    %c0_42 = arith.constant 0 : index
    %95 = vector.load %arg19[%94, %c0_42] : memref<32x32xf32, #tpu.memory_space<vmem>>, vector<1x32xf32>
    %c1 = arith.constant 1 : index
    %96 = memref.load %arg1[%c1] : memref<4xi32, #tpu.memory_space<smem>>
    %97 = arith.index_cast %96 : i32 to index
    %c0_43 = arith.constant 0 : index
    %98 = vector.load %arg19[%97, %c0_43] : memref<32x32xf32, #tpu.memory_space<vmem>>, vector<1x32xf32>
    %c2 = arith.constant 2 : index
    %99 = memref.load %arg1[%c2] : memref<4xi32, #tpu.memory_space<smem>>
    %100 = arith.index_cast %99 : i32 to index
    %c0_44 = arith.constant 0 : index
    %101 = vector.load %arg19[%100, %c0_44] : memref<32x32xf32, #tpu.memory_space<vmem>>, vector<1x32xf32>
    %c3 = arith.constant 3 : index
    %102 = memref.load %arg1[%c3] : memref<4xi32, #tpu.memory_space<smem>>
    %103 = arith.index_cast %102 : i32 to index
    %c0_45 = arith.constant 0 : index
    %104 = vector.load %arg19[%103, %c0_45] : memref<32x32xf32, #tpu.memory_space<vmem>>, vector<1x32xf32>
    %105 = tpu.concatenate %95, %98, %101, %104 in 0 : vector<1x32xf32>, vector<1x32xf32>, vector<1x32xf32>, vector<1x32xf32> -> vector<4x32xf32>
    %106 = arith.truncf %105 : vector<4x32xf32> to vector<4x32xbf16>
    %c0_46 = arith.constant 0 : index
    %c0_47 = arith.constant 0 : index
    %107 = vector.load %arg12[%c0_46, %c0_47] : memref<32x32xbf16, #tpu.memory_space<vmem>>, vector<32x32xbf16>
    %cst_48 = arith.constant dense<0.000000e+00> : vector<4x32xf32>
    %108 = tpu.matmul %106, %107, %cst_48 {dimension_numbers = #tpu.dot_dimension_numbers<[1], [0], [0], [1], [0, 0, 1, 1], [], []>} : vector<4x32xbf16>, vector<32x32xbf16>, vector<4x32xf32> -> vector<4x32xf32>
    %c0_49 = arith.constant 0 : index
    %c0_50 = arith.constant 0 : index
    %109 = vector.load %arg13[%c0_49, %c0_50] : memref<1x32xf32, #tpu.memory_space<vmem>>, vector<1x32xf32>
    %110 = vector.broadcast %109 : vector<1x32xf32> to vector<4x32xf32>
    %111 = arith.addf %108, %110 : vector<4x32xf32>
    %cst_51 = arith.constant 0.000000e+00 : f32
    %112 = vector.broadcast %cst_51 : f32 to vector<4x32xf32>
    %113 = arith.maximumf %111, %112 : vector<4x32xf32>
    %114 = arith.truncf %113 : vector<4x32xf32> to vector<4x32xbf16>
    %c0_52 = arith.constant 0 : index
    %c0_53 = arith.constant 0 : index
    %115 = vector.load %arg14[%c0_52, %c0_53] : memref<32x64xbf16, #tpu.memory_space<vmem>>, vector<32x64xbf16>
    %cst_54 = arith.constant dense<0.000000e+00> : vector<4x64xf32>
    %116 = tpu.matmul %114, %115, %cst_54 {dimension_numbers = #tpu.dot_dimension_numbers<[1], [0], [0], [1], [0, 0, 1, 1], [], []>} : vector<4x32xbf16>, vector<32x64xbf16>, vector<4x64xf32> -> vector<4x64xf32>
    %c0_55 = arith.constant 0 : index
    %c0_56 = arith.constant 0 : index
    %117 = vector.load %arg15[%c0_55, %c0_56] : memref<1x64xf32, #tpu.memory_space<vmem>>, vector<1x64xf32>
    %118 = vector.broadcast %117 : vector<1x64xf32> to vector<4x64xf32>
    %119 = arith.addf %116, %118 : vector<4x64xf32>
    %cst_57 = arith.constant 0.000000e+00 : f32
    %120 = vector.broadcast %cst_57 : f32 to vector<4x64xf32>
    %121 = arith.maximumf %119, %120 : vector<4x64xf32>
    %c0_58 = arith.constant 0 : index
    %c0_59 = arith.constant 0 : index
    %122 = vector.load %arg16[%c0_58, %c0_59] : memref<1x64xbf16, #tpu.memory_space<vmem>>, vector<1x64xbf16>
    %123 = arith.truncf %121 : vector<4x64xf32> to vector<4x64xbf16>
    %cst_60 = arith.constant dense<0.000000e+00> : vector<1x4xf32>
    %124 = tpu.matmul %122, %123, %cst_60 {dimension_numbers = #tpu.dot_dimension_numbers<[1], [1], [0], [0], [0, 0, 1, 0], [], []>} : vector<1x64xbf16>, vector<4x64xbf16>, vector<1x4xf32> -> vector<1x4xf32>
    %c0_61 = arith.constant 0 : index
    %c0_62 = arith.constant 0 : index
    %125 = vector.load %arg17[%c0_61, %c0_62] : memref<1x1xf32, #tpu.memory_space<vmem>>, vector<1x1xf32>
    %126 = vector.broadcast %125 : vector<1x1xf32> to vector<1x4xf32>
    %127 = arith.addf %124, %126 : vector<1x4xf32>
    %128 = arith.negf %127 : vector<1x4xf32>
    %129 = math.exp %128 : vector<1x4xf32>
    %cst_63 = arith.constant 1.000000e+00 : f32
    %130 = vector.broadcast %cst_63 : f32 to vector<1x4xf32>
    %131 = arith.addf %130, %129 : vector<1x4xf32>
    %132 = arith.divf %130, %131 : vector<1x4xf32>
    %c0_64 = arith.constant 0 : index
    %c0_65 = arith.constant 0 : index
    %133 = vector.load %arg18[%c0_64, %c0_65] : memref<1x4xf32, #tpu.memory_space<vmem>>, vector<1x4xf32>
    tpu.vector_store %arg18[%c0_64, %c0_65], %132 {strides = array<i32>} : memref<1x4xf32, #tpu.memory_space<vmem>>, vector<1x4xf32>,
    return
  }
  func.func @transform_0(%arg0: i32, %arg1: memref<4xi32, #tpu.memory_space<smem>>) -> (i32, i32) {
    %c0_i32 = arith.constant 0 : i32
    %c0_i32_0 = arith.constant 0 : i32
    %c0_i32_1 = arith.constant 0 : i32
    return %c0_i32, %c0_i32_0 : i32, i32
  }
  func.func @transform_1(%arg0: i32, %arg1: memref<4xi32, #tpu.memory_space<smem>>) -> (i32, i32) {
    %c0_i32 = arith.constant 0 : i32
    %c0_i32_0 = arith.constant 0 : i32
    %c0_i32_1 = arith.constant 0 : i32
    return %c0_i32, %c0_i32_0 : i32, i32
  }
  func.func @transform_2(%arg0: i32, %arg1: memref<4xi32, #tpu.memory_space<smem>>) -> (i32, i32) {
    %c0_i32 = arith.constant 0 : i32
    %c0_i32_0 = arith.constant 0 : i32
    %c0_i32_1 = arith.constant 0 : i32
    return %c0_i32, %c0_i32_0 : i32, i32
  }
  func.func @transform_3(%arg0: i32, %arg1: memref<4xi32, #tpu.memory_space<smem>>) -> (i32, i32) {
    %c0_i32 = arith.constant 0 : i32
    %c0_i32_0 = arith.constant 0 : i32
    %c0_i32_1 = arith.constant 0 : i32
    return %c0_i32, %c0_i32_0 : i32, i32
  }
  func.func @transform_4(%arg0: i32, %arg1: memref<4xi32, #tpu.memory_space<smem>>) -> (i32, i32) {
    %c0_i32 = arith.constant 0 : i32
    %c0_i32_0 = arith.constant 0 : i32
    %c0_i32_1 = arith.constant 0 : i32
    return %c0_i32, %c0_i32_0 : i32, i32
  }
  func.func @transform_5(%arg0: i32, %arg1: memref<4xi32, #tpu.memory_space<smem>>) -> (i32, i32) {
    %c0_i32 = arith.constant 0 : i32
    %c0_i32_0 = arith.constant 0 : i32
    %c0_i32_1 = arith.constant 0 : i32
    return %c0_i32, %c0_i32_0 : i32, i32
  }
  func.func @transform_6(%arg0: i32, %arg1: memref<4xi32, #tpu.memory_space<smem>>) -> (i32, i32) {
    %c0_i32 = arith.constant 0 : i32
    %c0_i32_0 = arith.constant 0 : i32
    %c0_i32_1 = arith.constant 0 : i32
    return %c0_i32, %c0_i32_0 : i32, i32
  }
  func.func @transform_7(%arg0: i32, %arg1: memref<4xi32, #tpu.memory_space<smem>>) -> (i32, i32) {
    %c0_i32 = arith.constant 0 : i32
    %c0_i32_0 = arith.constant 0 : i32
    %c0_i32_1 = arith.constant 0 : i32
    return %c0_i32, %c0_i32_0 : i32, i32
  }
  func.func @transform_8(%arg0: i32, %arg1: memref<4xi32, #tpu.memory_space<smem>>) -> (i32, i32) {
    %c0_i32 = arith.constant 0 : i32
    %c0_i32_0 = arith.constant 0 : i32
    %c0_i32_1 = arith.constant 0 : i32
    return %c0_i32, %c0_i32_0 : i32, i32
  }
  func.func @transform_9(%arg0: i32, %arg1: memref<4xi32, #tpu.memory_space<smem>>) -> (i32, i32) {
    %c0_i32 = arith.constant 0 : i32
    %c0_i32_0 = arith.constant 0 : i32
    %c0_i32_1 = arith.constant 0 : i32
    return %c0_i32, %c0_i32_0 : i32, i32
  }
  func.func @transform_10(%arg0: i32, %arg1: memref<4xi32, #tpu.memory_space<smem>>) -> (i32, i32) {
    %c0_i32 = arith.constant 0 : i32
    %c0_i32_0 = arith.constant 0 : i32
    %c0_i32_1 = arith.constant 0 : i32
    return %c0_i32, %c0_i32_0 : i32, i32
  }
  func.func @transform_11(%arg0: i32, %arg1: memref<4xi32, #tpu.memory_space<smem>>) -> (i32, i32) {
    %c0_i32 = arith.constant 0 : i32
    %c0_i32_0 = arith.constant 0 : i32
    %c0_i32_1 = arith.constant 0 : i32
    return %c0_i32, %c0_i32_0 : i32, i32
  }
  func.func @transform_12(%arg0: i32, %arg1: memref<4xi32, #tpu.memory_space<smem>>) -> (i32, i32) {
    %c0_i32 = arith.constant 0 : i32
    %c0_i32_0 = arith.constant 0 : i32
    %c0_i32_1 = arith.constant 0 : i32
    return %c0_i32, %c0_i32_0 : i32, i32
  }
  func.func @transform_13(%arg0: i32, %arg1: memref<4xi32, #tpu.memory_space<smem>>) -> (i32, i32) {
    %c0_i32 = arith.constant 0 : i32
    %c0_i32_0 = arith.constant 0 : i32
    %c0_i32_1 = arith.constant 0 : i32
    return %c0_i32, %c0_i32_0 : i32, i32
  }
  func.func @transform_14(%arg0: i32, %arg1: memref<4xi32, #tpu.memory_space<smem>>) -> (i32, i32) {
    %c0_i32 = arith.constant 0 : i32
    %c0_i32_0 = arith.constant 0 : i32
    %c0_i32_1 = arith.constant 0 : i32
    return %c0_i32, %c0_i32_0 : i32, i32
  }
  func.func @transform_15(%arg0: i32, %arg1: memref<4xi32, #tpu.memory_space<smem>>) -> (i32, i32) {
    %c0_i32 = arith.constant 0 : i32
    %c0_i32_0 = arith.constant 0 : i32
    %c0_i32_1 = arith.constant 0 : i32
    return %c0_i32, %c0_i32_0 : i32, i32
  }
  func.func @transform_16(%arg0: i32, %arg1: memref<4xi32, #tpu.memory_space<smem>>) -> (i32, i32) {
    %c0_i32 = arith.constant 0 : i32
    %c0_i32_0 = arith.constant 0 : i32
    %c0_i32_1 = arith.constant 0 : i32
    return %c0_i32, %c0_i32_0 : i32, i32
  }
}

</mosaic_0001>

<llo_original>
// kernel: tpu_custom_call.1
$region0: #{tpu_custom_call.1}
  #allocation0 [shape = 'u32[]', space=smem, size = 0x4, offset = 0x4, fixed_abs, tag = 'smem constant byte address 0x4 - core index']
  #allocation1 [shape = 'u32[144,128]{1,0:T(1,128)}', space=vmem, size = 0x12000, scoped, tag = 'internal scratch']
  #allocation2 [shape = 'f32[32,32]{1,0:T(8,128)}', space=vmem, size = 0x4000, scoped, tag = 'scratch operand']
  #allocation3 [shape = 's32[1]{0}', space=sflag, size = 0x4, scoped, tag = 'scoped memory for tpu_custom_call.1']
  #allocation4 [shape = 'u8[512]{0}', space=smem, size = 0x200, scoped, tag = 'prefetched SMEM operand 0']
  #allocation5 [shape = 'f32[1,1]{1,0:T(1,128)S(1)}', space=vmem, size = 0x200, scoped, tag = 'scoped memory for tpu_custom_call.1']
  %s0 = inlined_call_operand.vmem [shape: s32[4], index: 0, kind: input, shape index: {}]
  %s1 = inlined_call_operand.hbm [shape: bf16[32,32], index: 1, kind: input, shape index: {}]
  %s2 = inlined_call_operand.hbm [shape: bf16[32,32], index: 2, kind: input, shape index: {}]
  %s3 = inlined_call_operand.hbm [shape: bf16[32,32], index: 3, kind: input, shape index: {}]
  %s4 = inlined_call_operand.hbm [shape: f32[1,32], index: 4, kind: input, shape index: {}]
  %s5 = inlined_call_operand.vmem [shape: bf16[32,32], index: 5, kind: input, shape index: {}]
  %s6 = inlined_call_operand.hbm [shape: f32[1,32], index: 6, kind: input, shape index: {}]
  %s7 = inlined_call_operand.hbm [shape: f32[1,32], index: 7, kind: input, shape index: {}]
  %s8 = inlined_call_operand.hbm [shape: f32[1,32], index: 8, kind: input, shape index: {}]
  %s9 = inlined_call_operand.vmem [shape: bf16[32,96], index: 9, kind: input, shape index: {}]
  %s10 = inlined_call_operand.hbm [shape: f32[1,96], index: 10, kind: input, shape index: {}]
  %s11 = inlined_call_operand.hbm [shape: bf16[32,32], index: 11, kind: input, shape index: {}]
  %s12 = inlined_call_operand.hbm [shape: f32[1,32], index: 12, kind: input, shape index: {}]
  %s13 = inlined_call_operand.vmem [shape: bf16[32,64], index: 13, kind: input, shape index: {}]
  %s14 = inlined_call_operand.vmem [shape: f32[1,64], index: 14, kind: input, shape index: {}]
  %s15 = inlined_call_operand.vmem [shape: bf16[1,64], index: 15, kind: input, shape index: {}]
  %s16 = inlined_call_operand.<no memory space> [shape: f32[1,1], index: 16, kind: input, shape index: {}]
  %s17 = inlined_call_operand.hbm [shape: f32[1,4], index: 17, kind: output, shape index: {}]
  %s18 = sld [smem:[#allocation0]]
  $region114: #{tpu_custom_call.1} parent=0
    _
  %s20 = ssub.s32 1, %s18
  %s21 = scalar_select 0, %s20, %s18
  %s22 = sshll.u32 %s0, 4
  %s23 = int_to_ptr.vmem [resolvable:$true] %s22
  %25 = dma.vmem_to_smem %s23, 16, [#allocation4], [#allocation3]
  %v26 = vstv %s16
  %27 = vst [vmem:[#allocation5] sm:$0x1] %v26
  %28 = dma.done [#allocation3], 16
  %29 = sfence
  $region1: #{tpu_custom_call.1} parent=0
    #allocation6 [shape = 'u8[8192]{0}', space=vmem, size = 0x2000, scoped, tag = 'input window, operand 1, single buffered']
    #allocation7 [shape = 's32[1]{0}', space=sflag, size = 0x4, scoped, tag = 'scoped memory for tpu_custom_call.1']
    #allocation8 [shape = 's32[1]{0}', space=sflag, size = 0x4, scoped, tag = 'scoped memory for tpu_custom_call.1']
    #allocation9 [shape = 'u8[8192]{0}', space=vmem, size = 0x2000, scoped, tag = 'input window, operand 2, single buffered']
    #allocation10 [shape = 's32[1]{0}', space=sflag, size = 0x4, scoped, tag = 'scoped memory for tpu_custom_call.1']
    #allocation11 [shape = 'u8[8192]{0}', space=vmem, size = 0x2000, scoped, tag = 'input window, operand 3, single buffered']
    #allocation12 [shape = 'u8[512]{0}', space=vmem, size = 0x400, scoped, tag = 'input window, operand 4, single buffered']
    #allocation13 [shape = 's32[1]{0}', space=sflag, size = 0x4, scoped, tag = 'scoped memory for tpu_custom_call.1']
    #allocation14 [shape = 'u8[512]{0}', space=vmem, size = 0x400, scoped, tag = 'input window, operand 6, single buffered']
    #allocation15 [shape = 'u8[512]{0}', space=vmem, size = 0x400, scoped, tag = 'input window, operand 7, single buffered']
    #allocation16 [shape = 's32[1]{0}', space=sflag, size = 0x4, scoped, tag = 'scoped memory for tpu_custom_call.1']
    #allocation17 [shape = 'u8[512]{0}', space=vmem, size = 0x400, scoped, tag = 'input window, operand 8, single buffered']
    #allocation18 [shape = 'u8[512]{0}', space=vmem, size = 0x400, scoped, tag = 'input window, operand 10, single buffered']
    #allocation19 [shape = 's32[1]{0}', space=sflag, size = 0x4, scoped, tag = 'scoped memory for tpu_custom_call.1']
    #allocation20 [shape = 'u8[8192]{0}', space=vmem, size = 0x2000, scoped, tag = 'input window, operand 11, single buffered']
    #allocation21 [shape = 'u8[512]{0}', space=vmem, size = 0x400, scoped, tag = 'input window, operand 12, single buffered']
    #allocation22 [shape = 's32[1]{0}', space=sflag, size = 0x4, scoped, tag = 'scoped memory for tpu_custom_call.1']
    #allocation23 [shape = 'u8[512]{0}', space=vmem, size = 0x400, scoped, tag = 'output window, operand 0, single buffered']
    %30 = vsyncpa [#allocation7], 0
    %31 = vsyncpa [#allocation10], 0
    %32 = vsyncpa [#allocation13], 0
    %33 = vsyncpa [#allocation16], 0
    %34 = vsyncpa [#allocation19], 0
    %35 = vsyncpa [#allocation22], 0
    %36 = vsyncpa [#allocation8], 0
    // Predicated region
    $region2: #{tpu_custom_call.1} parent=1 // pred_check
      _
    $region3: #{tpu_custom_call.1} parent=1 // pred_check_branch
      %38 = sbr.rel (0) target = $region5
    $region4: #{tpu_custom_call.1} parent=1 // pred_region
      %s40 = ssub.s32 256, 256
      %41 = vsyncadd [#allocation7], %s40
      %s42 = sshll.u32 [#allocation6], 4
      %s43 = int_to_ptr.vmem [resolvable:$true] %s42
      %48 = dma.hbm_to_vmem [thread:$0]  %s1, 256, %s43, [#allocation7], 64, 64, 4
    $region5: #{tpu_custom_call.1} parent=1 // pred_fallthru
      _
    // Predicated region
    $region6: #{tpu_custom_call.1} parent=1 // pred_check
      _
    $region7: #{tpu_custom_call.1} parent=1 // pred_check_branch
      %50 = sbr.rel (0) target = $region9
    $region8: #{tpu_custom_call.1} parent=1 // pred_region
      %s52 = ssub.s32 256, 256
      %53 = vsyncadd [#allocation10], %s52
      %s54 = sshll.u32 [#allocation9], 4
      %s55 = int_to_ptr.vmem [resolvable:$true] %s54
      %60 = dma.hbm_to_vmem [thread:$0]  %s2, 256, %s55, [#allocation10], 64, 64, 4
    $region9: #{tpu_custom_call.1} parent=1 // pred_fallthru
      _
    // Predicated region
    $region10: #{tpu_custom_call.1} parent=1 // pred_check
      _
    $region11: #{tpu_custom_call.1} parent=1 // pred_check_branch
      %62 = sbr.rel (0) target = $region13
    $region12: #{tpu_custom_call.1} parent=1 // pred_region
      %s64 = ssub.s32 256, 256
      %65 = vsyncadd [#allocation10], %s64
      %s66 = sshll.u32 [#allocation11], 4
      %s67 = int_to_ptr.vmem [resolvable:$true] %s66
      %72 = dma.hbm_to_vmem [thread:$0]  %s3, 256, %s67, [#allocation10], 64, 64, 4
    $region13: #{tpu_custom_call.1} parent=1 // pred_fallthru
      _
    // Predicated region
    $region14: #{tpu_custom_call.1} parent=1 // pred_check
      _
    $region15: #{tpu_custom_call.1} parent=1 // pred_check_branch
      %74 = sbr.rel (0) target = $region17
    $region16: #{tpu_custom_call.1} parent=1 // pred_region
      %s76 = ssub.s32 16, 16
      %77 = vsyncadd [#allocation13], %s76
      %s79 = sshll.u32 [#allocation12], 4
      %s80 = int_to_ptr.vmem [resolvable:$true] %s79
      %82 = dma.hbm_to_vmem [thread:$0]  %s4, 16, %s80, [#allocation13]
    $region17: #{tpu_custom_call.1} parent=1 // pred_fallthru
      _
    // Predicated region
    $region18: #{tpu_custom_call.1} parent=1 // pred_check
      _
    $region19: #{tpu_custom_call.1} parent=1 // pred_check_branch
      %84 = sbr.rel (0) target = $region21
    $region20: #{tpu_custom_call.1} parent=1 // pred_region
      _
    $region21: #{tpu_custom_call.1} parent=1 // pred_fallthru
      _
    // Predicated region
    $region22: #{tpu_custom_call.1} parent=1 // pred_check
      _
    $region23: #{tpu_custom_call.1} parent=1 // pred_check_branch
      %86 = sbr.rel (0) target = $region25
    $region24: #{tpu_custom_call.1} parent=1 // pred_region
      %s88 = ssub.s32 16, 16
      %89 = vsyncadd [#allocation13], %s88
      %s91 = sshll.u32 [#allocation14], 4
      %s92 = int_to_ptr.vmem [resolvable:$true] %s91
      %94 = dma.hbm_to_vmem [thread:$0]  %s6, 16, %s92, [#allocation13]
    $region25: #{tpu_custom_call.1} parent=1 // pred_fallthru
      _
    // Predicated region
    $region26: #{tpu_custom_call.1} parent=1 // pred_check
      _
    $region27: #{tpu_custom_call.1} parent=1 // pred_check_branch
      %96 = sbr.rel (0) target = $region29
    $region28: #{tpu_custom_call.1} parent=1 // pred_region
      %s98 = ssub.s32 16, 16
      %99 = vsyncadd [#allocation16], %s98
      %s101 = sshll.u32 [#allocation15], 4
      %s102 = int_to_ptr.vmem [resolvable:$true] %s101
      %104 = dma.hbm_to_vmem [thread:$0]  %s7, 16, %s102, [#allocation16]
    $region29: #{tpu_custom_call.1} parent=1 // pred_fallthru
      _
    // Predicated region
    $region30: #{tpu_custom_call.1} parent=1 // pred_check
      _
    $region31: #{tpu_custom_call.1} parent=1 // pred_check_branch
      %106 = sbr.rel (0) target = $region33
    $region32: #{tpu_custom_call.1} parent=1 // pred_region
      %s108 = ssub.s32 16, 16
      %109 = vsyncadd [#allocation16], %s108
      %s111 = sshll.u32 [#allocation17], 4
      %s112 = int_to_ptr.vmem [resolvable:$true] %s111
      %114 = dma.hbm_to_vmem [thread:$0]  %s8, 16, %s112, [#allocation16]
    $region33: #{tpu_custom_call.1} parent=1 // pred_fallthru
      _
    // Predicated region
    $region34: #{tpu_custom_call.1} parent=1 // pred_check
      _
    $region35: #{tpu_custom_call.1} parent=1 // pred_check_branch
      %116 = sbr.rel (0) target = $region37
    $region36: #{tpu_custom_call.1} parent=1 // pred_region
      _
    $region37: #{tpu_custom_call.1} parent=1 // pred_fallthru
      _
    // Predicated region
    $region38: #{tpu_custom_call.1} parent=1 // pred_check
      _
    $region39: #{tpu_custom_call.1} parent=1 // pred_check_branch
      %118 = sbr.rel (0) target = $region41
    $region40: #{tpu_custom_call.1} parent=1 // pred_region
      %s120 = ssub.s32 16, 16
      %121 = vsyncadd [#allocation19], %s120
      %s123 = sshll.u32 [#allocation18], 4
      %s124 = int_to_ptr.vmem [resolvable:$true] %s123
      %126 = dma.hbm_to_vmem [thread:$0]  %s10, 16, %s124, [#allocation19]
    $region41: #{tpu_custom_call.1} parent=1 // pred_fallthru
      _
    // Predicated region
    $region42: #{tpu_custom_call.1} parent=1 // pred_check
      _
    $region43: #{tpu_custom_call.1} parent=1 // pred_check_branch
      %128 = sbr.rel (0) target = $region45
    $region44: #{tpu_custom_call.1} parent=1 // pred_region
      %s130 = ssub.s32 256, 256
      %131 = vsyncadd [#allocation19], %s130
      %s132 = sshll.u32 [#allocation20], 4
      %s133 = int_to_ptr.vmem [resolvable:$true] %s132
      %138 = dma.hbm_to_vmem [thread:$0]  %s11, 256, %s133, [#allocation19], 64, 64, 4
    $region45: #{tpu_custom_call.1} parent=1 // pred_fallthru
      _
    // Predicated region
    $region46: #{tpu_custom_call.1} parent=1 // pred_check
      _
    $region47: #{tpu_custom_call.1} parent=1 // pred_check_branch
      %140 = sbr.rel (0) target = $region49
    $region48: #{tpu_custom_call.1} parent=1 // pred_region
      %s142 = ssub.s32 16, 16
      %143 = vsyncadd [#allocation22], %s142
      %s145 = sshll.u32 [#allocation21], 4
      %s146 = int_to_ptr.vmem [resolvable:$true] %s145
      %148 = dma.hbm_to_vmem [thread:$0]  %s12, 16, %s146, [#allocation22]
    $region49: #{tpu_custom_call.1} parent=1 // pred_fallthru
      _
    // Predicated region
    $region50: #{tpu_custom_call.1} parent=1 // pred_check
      _
    $region51: #{tpu_custom_call.1} parent=1 // pred_check_branch
      %150 = sbr.rel (0) target = $region53
    $region52: #{tpu_custom_call.1} parent=1 // pred_region
      _
    $region53: #{tpu_custom_call.1} parent=1 // pred_fallthru
      _
    // Predicated region
    $region54: #{tpu_custom_call.1} parent=1 // pred_check
      _
    $region55: #{tpu_custom_call.1} parent=1 // pred_check_branch
      %152 = sbr.rel (0) target = $region57
    $region56: #{tpu_custom_call.1} parent=1 // pred_region
      _
    $region57: #{tpu_custom_call.1} parent=1 // pred_fallthru
      _
    // Predicated region
    $region58: #{tpu_custom_call.1} parent=1 // pred_check
      _
    $region59: #{tpu_custom_call.1} parent=1 // pred_check_branch
      %154 = sbr.rel (0) target = $region61
    $region60: #{tpu_custom_call.1} parent=1 // pred_region
      _
    $region61: #{tpu_custom_call.1} parent=1 // pred_fallthru
      _
    // Predicated region
    $region62: #{tpu_custom_call.1} parent=1 // pred_check
      _
    $region63: #{tpu_custom_call.1} parent=1 // pred_check_branch
      %156 = sbr.rel (0) target = $region65
    $region64: #{tpu_custom_call.1} parent=1 // pred_region
      _
    $region65: #{tpu_custom_call.1} parent=1 // pred_fallthru
      _
    // Predicated region
    $region66: #{tpu_custom_call.1} parent=1 // pred_check
      _
    $region67: #{tpu_custom_call.1} parent=1 // pred_check_branch
      %158 = sbr.rel (0) target = $region69
    $region68: #{tpu_custom_call.1} parent=1 // pred_region
      %159 = dma.done [#allocation7], 256
    $region69: #{tpu_custom_call.1} parent=1 // pred_fallthru
      _
    // Predicated region
    $region70: #{tpu_custom_call.1} parent=1 // pred_check
      _
    $region71: #{tpu_custom_call.1} parent=1 // pred_check_branch
      %161 = sbr.rel (0) target = $region73
    $region72: #{tpu_custom_call.1} parent=1 // pred_region
      %162 = dma.done [#allocation10], 256
    $region73: #{tpu_custom_call.1} parent=1 // pred_fallthru
      _
    // Predicated region
    $region74: #{tpu_custom_call.1} parent=1 // pred_check
      _
    $region75: #{tpu_custom_call.1} parent=1 // pred_check_branch
      %164 = sbr.rel (0) target = $region77
    $region76: #{tpu_custom_call.1} parent=1 // pred_region
      %165 = dma.done [#allocation10], 256
    $region77: #{tpu_custom_call.1} parent=1 // pred_fallthru
      _
    // Predicated region
    $region78: #{tpu_custom_call.1} parent=1 // pred_check
      _
    $region79: #{tpu_custom_call.1} parent=1 // pred_check_branch
      %167 = sbr.rel (0) target = $region81
    $region80: #{tpu_custom_call.1} parent=1 // pred_region
      %168 = dma.done [#allocation13], 16
    $region81: #{tpu_custom_call.1} parent=1 // pred_fallthru
      _
    // Predicated region
    $region82: #{tpu_custom_call.1} parent=1 // pred_check
      _
    $region83: #{tpu_custom_call.1} parent=1 // pred_check_branch
      %170 = sbr.rel (0) target = $region85
    $region84: #{tpu_custom_call.1} parent=1 // pred_region
      %171 = dma.done [#allocation13], 16
    $region85: #{tpu_custom_call.1} parent=1 // pred_fallthru
      _
    // Predicated region
    $region86: #{tpu_custom_call.1} parent=1 // pred_check
      _
    $region87: #{tpu_custom_call.1} parent=1 // pred_check_branch
      %173 = sbr.rel (0) target = $region89
    $region88: #{tpu_custom_call.1} parent=1 // pred_region
      %174 = dma.done [#allocation16], 16
    $region89: #{tpu_custom_call.1} parent=1 // pred_fallthru
      _
    // Predicated region
    $region90: #{tpu_custom_call.1} parent=1 // pred_check
      _
    $region91: #{tpu_custom_call.1} parent=1 // pred_check_branch
      %176 = sbr.rel (0) target = $region93
    $region92: #{tpu_custom_call.1} parent=1 // pred_region
      %177 = dma.done [#allocation16], 16
    $region93: #{tpu_custom_call.1} parent=1 // pred_fallthru
      _
    // Predicated region
    $region94: #{tpu_custom_call.1} parent=1 // pred_check
      _
    $region95: #{tpu_custom_call.1} parent=1 // pred_check_branch
      %179 = sbr.rel (0) target = $region97
    $region96: #{tpu_custom_call.1} parent=1 // pred_region
      %180 = dma.done [#allocation19], 16
    $region97: #{tpu_custom_call.1} parent=1 // pred_fallthru
      _
    // Predicated region
    $region98: #{tpu_custom_call.1} parent=1 // pred_check
      _
    $region99: #{tpu_custom_call.1} parent=1 // pred_check_branch
      %182 = sbr.rel (0) target = $region101
    $region100: #{tpu_custom_call.1} parent=1 // pred_region
      %183 = dma.done [#allocation19], 256
    $region101: #{tpu_custom_call.1} parent=1 // pred_fallthru
      _
    // Predicated region
    $region102: #{tpu_custom_call.1} parent=1 // pred_check
      _
    $region103: #{tpu_custom_call.1} parent=1 // pred_check_branch
      %185 = sbr.rel (0) target = $region105
    $region104: #{tpu_custom_call.1} parent=1 // pred_region
      %186 = dma.done [#allocation22], 16
    $region105: #{tpu_custom_call.1} parent=1 // pred_fallthru
      _
    %v188 = vld [vmem:[#allocation6] sm:$0xf]
    %v189 = vld [vmem:[#allocation6 + $0x4] sm:$0xf]
    %v190 = vld [vmem:[#allocation6 + $0x8] sm:$0xf]
    %v191 = vld [vmem:[#allocation6 + $0xc] sm:$0xf]
    %v192 = vld [vmem:[#allocation9] sm:$0xf]
    %v193 = vld [vmem:[#allocation9 + $0x4] sm:$0xf]
    %v194 = vld [vmem:[#allocation9 + $0x8] sm:$0xf]
    %v195 = vld [vmem:[#allocation9 + $0xc] sm:$0xf]
    %v196 = vld [vmem:[#allocation15] sm:$0x1]
    %v197 = vld [vmem:[#allocation17] sm:$0x1]
    %v198 = vld [vmem:[#allocation11] sm:$0xf]
    %v199 = vld [vmem:[#allocation11 + $0x4] sm:$0xf]
    %v200 = vld [vmem:[#allocation11 + $0x8] sm:$0xf]
    %v201 = vld [vmem:[#allocation11 + $0xc] sm:$0xf]
    %v202 = vld [vmem:[#allocation12] sm:$0x1]
    %v207 = vunpack.c.l.b16 %v192
    %v208 = vunpack.c.l.b16 %v193
    %v209 = vunpack.c.l.b16 %v194
    %v210 = vunpack.c.l.b16 %v195
    %v211 = vpack.c.b16 %v208, %v207
    %v212 = vpack.c.b16 %v210, %v209
    %v217 = vunpack.c.l.b16 %v198
    %v218 = vunpack.c.l.b16 %v199
    %v219 = vunpack.c.l.b16 %v200
    %v220 = vunpack.c.l.b16 %v201
    %v221 = vpack.c.b16 %v218, %v217
    %v222 = vpack.c.b16 %v220, %v219
    %vm225 = vcmask 261120
    %v227 = vsel %vm225, %v211, 0
    %v230 = vsel %vm225, %v212, 0
    %232 = vmatprep.subr.bf16.mxu0 0
    %233 = vmatpush1.bf16.msra.mxu0 %v221
    %234 = vmatprep.subr.bf16.mxu0 0
    %235 = vmatpush1.bf16.msra.mxu0 %v222
    %236 = vmatprep.subr.bf16.mxu0 0
    %237 = vmatpush1.bf16.msra.mxu0 0
    %238 = vmatprep.subr.bf16.mxu0 0
    %239 = vmatpush1.bf16.msra.mxu0 0
    %240 = vmatprep.subr.bf16.mxu0 0
    %241 = vmatpush1.bf16.msra.mxu0 0
    %242 = vmatprep.subr.bf16.mxu0 0
    %243 = vmatpush1.bf16.msra.mxu0 0
    %244 = vmatprep.subr.bf16.mxu0 0
    %245 = vmatpush1.bf16.msra.mxu0 0
    %246 = vmatprep.subr.bf16.mxu0 0
    %247 = vmatpush1.bf16.msra.mxu0 0
    %248 = vmatprep.subr.bf16.mxu0 0
    %249 = vmatpush1.bf16.msra.mxu0 0
    %250 = vmatprep.subr.bf16.mxu0 0
    %251 = vmatpush1.bf16.msra.mxu0 0
    %252 = vmatprep.subr.bf16.mxu0 0
    %253 = vmatpush1.bf16.msra.mxu0 0
    %254 = vmatprep.subr.bf16.mxu0 0
    %255 = vmatpush1.bf16.msra.mxu0 0
    %256 = vmatprep.subr.bf16.mxu0 0
    %257 = vmatpush1.bf16.msra.mxu0 0
    %258 = vmatprep.subr.bf16.mxu0 0
    %259 = vmatpush1.bf16.msra.mxu0 0
    %260 = vmatprep.subr.bf16.mxu0 0
    %261 = vmatpush1.bf16.msra.mxu0 0
    %262 = vmatprep.subr.bf16.mxu0 0
    %263 = vmatpush1.bf16.msra.mxu0 0
    %264 = vmatprep.mubr.bf16.mxu0 0
    %265 = vmatmul.mubr.bf16.gmra.mrb[0].mxu0 %v227
    %v266 = vpop.f32.mrb[0].mxu0
    %v267 = vadd.f32 0.0, %v266
    %v268 = vpop.f32.mrb[0].mxu0
    %v269 = vpop.f32.mrb[0].mxu0
    %v270 = vadd.f32 0.0, %v269
    %v271 = vpop.f32.mrb[0].mxu0
    %272 = vmatprep.mubr.bf16.mxu0 0
    %273 = vmatmul.mubr.bf16.gmra.mrb[0].mxu0 %v230
    %v274 = vpop.f32.mrb[0].mxu0
    %v275 = vadd.f32 0.0, %v274
    %v276 = vpop.f32.mrb[0].mxu0
    %v277 = vpop.f32.mrb[0].mxu0
    %v278 = vadd.f32 0.0, %v277
    %v279 = vpop.f32.mrb[0].mxu0
    %280 = vdwg.mxu0
    %v281 = vpack.c.bf16 %v270, %v267
    %v282 = vpack.c.bf16 %v278, %v275
    %v284 = vlaneseq
    %v285 = vshrl.u32 %v284, 7
    %v286 = vsub.s32 0, %v285
    %v287 = vrot.slane %v202, %v286
    %v293 = vunpack.c.l.b16 %v188
    %v294 = vunpack.c.l.b16 %v189
    %v295 = vunpack.c.l.b16 %v190
    %v296 = vunpack.c.l.b16 %v191
    %v297 = vpack.c.b16 %v294, %v293
    %v298 = vpack.c.b16 %v296, %v295
    %v300 = vsel %vm225, %v297, 0
    %v303 = vsel %vm225, %v298, 0
    %305 = vmatprep.subr.bf16.mxu0 0
    %306 = vmatpush1.bf16.msra.mxu0 %v281
    %307 = vmatprep.subr.bf16.mxu0 0
    %308 = vmatpush1.bf16.msra.mxu0 %v282
    %309 = vmatprep.subr.bf16.mxu0 0
    %310 = vmatpush1.bf16.msra.mxu0 0
    %311 = vmatprep.subr.bf16.mxu0 0
    %312 = vmatpush1.bf16.msra.mxu0 0
    %313 = vmatprep.subr.bf16.mxu0 0
    %314 = vmatpush1.bf16.msra.mxu0 0
    %315 = vmatprep.subr.bf16.mxu0 0
    %316 = vmatpush1.bf16.msra.mxu0 0
    %317 = vmatprep.subr.bf16.mxu0 0
    %318 = vmatpush1.bf16.msra.mxu0 0
    %319 = vmatprep.subr.bf16.mxu0 0
    %320 = vmatpush1.bf16.msra.mxu0 0
    %321 = vmatprep.subr.bf16.mxu0 0
    %322 = vmatpush1.bf16.msra.mxu0 0
    %323 = vmatprep.subr.bf16.mxu0 0
    %324 = vmatpush1.bf16.msra.mxu0 0
    %325 = vmatprep.subr.bf16.mxu0 0
    %326 = vmatpush1.bf16.msra.mxu0 0
    %327 = vmatprep.subr.bf16.mxu0 0
    %328 = vmatpush1.bf16.msra.mxu0 0
    %329 = vmatprep.subr.bf16.mxu0 0
    %330 = vmatpush1.bf16.msra.mxu0 0
    %331 = vmatprep.subr.bf16.mxu0 0
    %332 = vmatpush1.bf16.msra.mxu0 0
    %333 = vmatprep.subr.bf16.mxu0 0
    %334 = vmatpush1.bf16.msra.mxu0 0
    %335 = vmatprep.subr.bf16.mxu0 0
    %336 = vmatpush1.bf16.msra.mxu0 0
    %337 = vmatprep.mubr.bf16.mxu0 0
    %338 = vmatmul.mubr.bf16.gmra.mrb[0].mxu0 %v300
    %v339 = vpop.f32.mrb[0].mxu0
    %v340 = vadd.f32 %v287, %v339
    %v341 = vpop.f32.mrb[0].mxu0
    %v342 = vpop.f32.mrb[0].mxu0
    %v343 = vadd.f32 %v287, %v342
    %v344 = vpop.f32.mrb[0].mxu0
    %345 = vmatprep.mubr.bf16.mxu0 0
    %346 = vmatmul.mubr.bf16.gmra.mrb[0].mxu0 %v303
    %v347 = vpop.f32.mrb[0].mxu0
    %v348 = vadd.f32 %v287, %v347
    %v349 = vpop.f32.mrb[0].mxu0
    %v350 = vpop.f32.mrb[0].mxu0
    %v351 = vadd.f32 %v287, %v350
    %v352 = vpop.f32.mrb[0].mxu0
    %353 = vdwg.mxu0
    %v354 = vsel %vm225, %v340, 0.0
    %355 = vadd.xlane.f32.xlu0 %v354
    %v356 = vpop.xlane.xlu0 %355
    %v357 = vsel %vm225, %v343, 0.0
    %358 = vadd.xlane.f32.xlu0 %v357
    %v359 = vpop.xlane.xlu0 %358
    %v360 = vsel %vm225, %v348, 0.0
    %361 = vadd.xlane.f32.xlu0 %v360
    %v362 = vpop.xlane.xlu0 %361
    %v363 = vsel %vm225, %v351, 0.0
    %364 = vadd.xlane.f32.xlu0 %v363
    %v365 = vpop.xlane.xlu0 %364
    %v366 = vrcp.pop 32.0
    %v367 = vmul.f32 %v356, %v366
    %v368 = vmul.f32 %v359, %v366
    %v369 = vmul.f32 %v362, %v366
    %v370 = vmul.f32 %v365, %v366
    %v371 = vsub.f32 %v340, %v367
    %v372 = vsub.f32 %v343, %v368
    %v373 = vsub.f32 %v348, %v369
    %v374 = vsub.f32 %v351, %v370
    %v375 = vmul.f32 %v371, %v371
    %v376 = vmul.f32 %v372, %v372
    %v377 = vmul.f32 %v373, %v373
    %v378 = vmul.f32 %v374, %v374
    %v379 = vsel %vm225, %v375, 0.0
    %380 = vadd.xlane.f32.xlu0 %v379
    %v381 = vpop.xlane.xlu0 %380
    %v382 = vsel %vm225, %v376, 0.0
    %383 = vadd.xlane.f32.xlu0 %v382
    %v384 = vpop.xlane.xlu0 %383
    %v385 = vsel %vm225, %v377, 0.0
    %386 = vadd.xlane.f32.xlu0 %v385
    %v387 = vpop.xlane.xlu0 %386
    %v388 = vsel %vm225, %v378, 0.0
    %389 = vadd.xlane.f32.xlu0 %v388
    %v390 = vpop.xlane.xlu0 %389
    %v391 = vmul.f32 %v381, %v366
    %v392 = vmul.f32 %v384, %v366
    %v393 = vmul.f32 %v387, %v366
    %v394 = vmul.f32 %v390, %v366
    %v395 = vadd.f32 %v391, 1e-05
    %v396 = vadd.f32 %v392, 1e-05
    %v397 = vadd.f32 %v393, 1e-05
    %v398 = vadd.f32 %v394, 1e-05
    %v399 = vrsqrt.pop %v395
    %v400 = vrsqrt.pop %v396
    %v401 = vrsqrt.pop %v397
    %v402 = vrsqrt.pop %v398
    %v403 = vmul.f32 %v371, %v399
    %v404 = vmul.f32 %v372, %v400
    %v405 = vmul.f32 %v373, %v401
    %v406 = vmul.f32 %v374, %v402
    %v408 = vlaneseq
    %v409 = vshrl.u32 %v408, 7
    %v410 = vsub.s32 0, %v409
    %v411 = vrot.slane %v196, %v410
    %v413 = vmul.f32 %v403, %v411
    %v414 = vmul.f32 %v404, %v411
    %v415 = vmul.f32 %v405, %v411
    %v416 = vmul.f32 %v406, %v411
    %v418 = vlaneseq
    %v419 = vshrl.u32 %v418, 7
    %v420 = vsub.s32 0, %v419
    %v421 = vrot.slane %v197, %v420
    %v423 = vadd.f32 %v413, %v421
    %v424 = vadd.f32 %v414, %v421
    %v425 = vadd.f32 %v415, %v421
    %v426 = vadd.f32 %v416, %v421
    %v427 = vmax.f32 %v423, 0.0
    %v428 = vmax.f32 %v424, 0.0
    %v429 = vmax.f32 %v425, 0.0
    %v430 = vmax.f32 %v426, 0.0
    %v431 = vpack.c.bf16 %v428, %v427
    %v432 = vpack.c.bf16 %v430, %v429
    %v433 = vld [vmem:[%s5] sm:$0xf]
    %v434 = vld [vmem:[%s5 + $0x4] sm:$0xf]
    %v435 = vld [vmem:[%s5 + $0x8] sm:$0xf]
    %v436 = vld [vmem:[%s5 + $0xc] sm:$0xf]
    %v437 = vld [vmem:[#allocation14] sm:$0x1]
    %v442 = vunpack.c.l.b16 %v433
    %v443 = vunpack.c.l.b16 %v434
    %v444 = vunpack.c.l.b16 %v435
    %v445 = vunpack.c.l.b16 %v436
    %v446 = vpack.c.b16 %v443, %v442
    %v447 = vpack.c.b16 %v445, %v444
    %v451 = vsel %vm225, %v431, 0
    %v454 = vsel %vm225, %v432, 0
    %456 = vmatprep.subr.bf16.mxu0 0
    %457 = vmatpush1.bf16.msra.mxu0 %v446
    %458 = vmatprep.subr.bf16.mxu0 0
    %459 = vmatpush1.bf16.msra.mxu0 %v447
    %460 = vmatprep.subr.bf16.mxu0 0
    %461 = vmatpush1.bf16.msra.mxu0 0
    %462 = vmatprep.subr.bf16.mxu0 0
    %463 = vmatpush1.bf16.msra.mxu0 0
    %464 = vmatprep.subr.bf16.mxu0 0
    %465 = vmatpush1.bf16.msra.mxu0 0
    %466 = vmatprep.subr.bf16.mxu0 0
    %467 = vmatpush1.bf16.msra.mxu0 0
    %468 = vmatprep.subr.bf16.mxu0 0
    %469 = vmatpush1.bf16.msra.mxu0 0
    %470 = vmatprep.subr.bf16.mxu0 0
    %471 = vmatpush1.bf16.msra.mxu0 0
    %472 = vmatprep.subr.bf16.mxu0 0
    %473 = vmatpush1.bf16.msra.mxu0 0
    %474 = vmatprep.subr.bf16.mxu0 0
    %475 = vmatpush1.bf16.msra.mxu0 0
    %476 = vmatprep.subr.bf16.mxu0 0
    %477 = vmatpush1.bf16.msra.mxu0 0
    %478 = vmatprep.subr.bf16.mxu0 0
    %479 = vmatpush1.bf16.msra.mxu0 0
    %480 = vmatprep.subr.bf16.mxu0 0
    %481 = vmatpush1.bf16.msra.mxu0 0
    %482 = vmatprep.subr.bf16.mxu0 0
    %483 = vmatpush1.bf16.msra.mxu0 0
    %484 = vmatprep.subr.bf16.mxu0 0
    %485 = vmatpush1.bf16.msra.mxu0 0
    %486 = vmatprep.subr.bf16.mxu0 0
    %487 = vmatpush1.bf16.msra.mxu0 0
    %488 = vmatprep.mubr.bf16.mxu0 0
    %489 = vmatmul.mubr.bf16.gmra.mrb[0].mxu0 %v451
    %v490 = vpop.f32.mrb[0].mxu0
    %v491 = vadd.f32 0.0, %v490
    %v492 = vpop.f32.mrb[0].mxu0
    %v493 = vpop.f32.mrb[0].mxu0
    %v494 = vadd.f32 0.0, %v493
    %v495 = vpop.f32.mrb[0].mxu0
    %496 = vmatprep.mubr.bf16.mxu0 0
    %497 = vmatmul.mubr.bf16.gmra.mrb[0].mxu0 %v454
    %v498 = vpop.f32.mrb[0].mxu0
    %v499 = vadd.f32 0.0, %v498
    %v500 = vpop.f32.mrb[0].mxu0
    %v501 = vpop.f32.mrb[0].mxu0
    %v502 = vadd.f32 0.0, %v501
    %v503 = vpop.f32.mrb[0].mxu0
    %504 = vdwg.mxu0
    %v505 = vpack.c.bf16 %v494, %v491
    %v506 = vpack.c.bf16 %v502, %v499
    %v508 = vlaneseq
    %v509 = vshrl.u32 %v508, 7
    %v510 = vsub.s32 0, %v509
    %v511 = vrot.slane %v437, %v510
    %513 = vmatprep.subr.bf16.mxu0 0
    %514 = vmatpush1.bf16.msra.mxu0 %v505
    %515 = vmatprep.subr.bf16.mxu0 0
    %516 = vmatpush1.bf16.msra.mxu0 %v506
    %517 = vmatprep.subr.bf16.mxu0 0
    %518 = vmatpush1.bf16.msra.mxu0 0
    %519 = vmatprep.subr.bf16.mxu0 0
    %520 = vmatpush1.bf16.msra.mxu0 0
    %521 = vmatprep.subr.bf16.mxu0 0
    %522 = vmatpush1.bf16.msra.mxu0 0
    %523 = vmatprep.subr.bf16.mxu0 0
    %524 = vmatpush1.bf16.msra.mxu0 0
    %525 = vmatprep.subr.bf16.mxu0 0
    %526 = vmatpush1.bf16.msra.mxu0 0
    %527 = vmatprep.subr.bf16.mxu0 0
    %528 = vmatpush1.bf16.msra.mxu0 0
    %529 = vmatprep.subr.bf16.mxu0 0
    %530 = vmatpush1.bf16.msra.mxu0 0
    %531 = vmatprep.subr.bf16.mxu0 0
    %532 = vmatpush1.bf16.msra.mxu0 0
    %533 = vmatprep.subr.bf16.mxu0 0
    %534 = vmatpush1.bf16.msra.mxu0 0
    %535 = vmatprep.subr.bf16.mxu0 0
    %536 = vmatpush1.bf16.msra.mxu0 0
    %537 = vmatprep.subr.bf16.mxu0 0
    %538 = vmatpush1.bf16.msra.mxu0 0
    %539 = vmatprep.subr.bf16.mxu0 0
    %540 = vmatpush1.bf16.msra.mxu0 0
    %541 = vmatprep.subr.bf16.mxu0 0
    %542 = vmatpush1.bf16.msra.mxu0 0
    %543 = vmatprep.subr.bf16.mxu0 0
    %544 = vmatpush1.bf16.msra.mxu0 0
    %545 = vmatprep.mubr.bf16.mxu0 0
    %546 = vmatmul.mubr.bf16.gmra.mrb[0].mxu0 %v300
    %v547 = vpop.f32.mrb[0].mxu0
    %v548 = vadd.f32 %v511, %v547
    %v549 = vpop.f32.mrb[0].mxu0
    %v550 = vpop.f32.mrb[0].mxu0
    %v551 = vadd.f32 %v511, %v550
    %v552 = vpop.f32.mrb[0].mxu0
    %553 = vmatprep.mubr.bf16.mxu0 0
    %554 = vmatmul.mubr.bf16.gmra.mrb[0].mxu0 %v303
    %v555 = vpop.f32.mrb[0].mxu0
    %v556 = vadd.f32 %v511, %v555
    %v557 = vpop.f32.mrb[0].mxu0
    %v558 = vpop.f32.mrb[0].mxu0
    %v559 = vadd.f32 %v511, %v558
    %v560 = vpop.f32.mrb[0].mxu0
    %561 = vdwg.mxu0
    %v562 = vsel %vm225, %v548, 0.0
    %563 = vadd.xlane.f32.xlu0 %v562
    %v564 = vpop.xlane.xlu0 %563
    %v565 = vsel %vm225, %v551, 0.0
    %566 = vadd.xlane.f32.xlu0 %v565
    %v567 = vpop.xlane.xlu0 %566
    %v568 = vsel %vm225, %v556, 0.0
    %569 = vadd.xlane.f32.xlu0 %v568
    %v570 = vpop.xlane.xlu0 %569
    %v571 = vsel %vm225, %v559, 0.0
    %572 = vadd.xlane.f32.xlu0 %v571
    %v573 = vpop.xlane.xlu0 %572
    %v574 = vmul.f32 %v564, %v366
    %v575 = vmul.f32 %v567, %v366
    %v576 = vmul.f32 %v570, %v366
    %v577 = vmul.f32 %v573, %v366
    %v578 = vsub.f32 %v548, %v574
    %v579 = vsub.f32 %v551, %v575
    %v580 = vsub.f32 %v556, %v576
    %v581 = vsub.f32 %v559, %v577
    %v582 = vmul.f32 %v578, %v578
    %v583 = vmul.f32 %v579, %v579
    %v584 = vmul.f32 %v580, %v580
    %v585 = vmul.f32 %v581, %v581
    %v586 = vsel %vm225, %v582, 0.0
    %587 = vadd.xlane.f32.xlu0 %v586
    %v588 = vpop.xlane.xlu0 %587
    %v589 = vsel %vm225, %v583, 0.0
    %590 = vadd.xlane.f32.xlu0 %v589
    %v591 = vpop.xlane.xlu0 %590
    %v592 = vsel %vm225, %v584, 0.0
    %593 = vadd.xlane.f32.xlu0 %v592
    %v594 = vpop.xlane.xlu0 %593
    %v595 = vsel %vm225, %v585, 0.0
    %596 = vadd.xlane.f32.xlu0 %v595
    %v597 = vpop.xlane.xlu0 %596
    %v598 = vmul.f32 %v588, %v366
    %v599 = vmul.f32 %v591, %v366
    %v600 = vmul.f32 %v594, %v366
    %v601 = vmul.f32 %v597, %v366
    %v602 = vadd.f32 %v598, 1e-05
    %v603 = vadd.f32 %v599, 1e-05
    %v604 = vadd.f32 %v600, 1e-05
    %v605 = vadd.f32 %v601, 1e-05
    %v606 = vrsqrt.pop %v602
    %v607 = vrsqrt.pop %v603
    %v608 = vrsqrt.pop %v604
    %v609 = vrsqrt.pop %v605
    %v610 = vmul.f32 %v578, %v606
    %v611 = vmul.f32 %v579, %v607
    %v612 = vmul.f32 %v580, %v608
    %v613 = vmul.f32 %v581, %v609
    %v614 = vmul.f32 %v610, %v411
    %v615 = vmul.f32 %v611, %v411
    %v616 = vmul.f32 %v612, %v411
    %v617 = vmul.f32 %v613, %v411
    %v618 = vadd.f32 %v614, %v421
    %v619 = vadd.f32 %v615, %v421
    %v620 = vadd.f32 %v616, %v421
    %v621 = vadd.f32 %v617, %v421
    %v622 = vmax.f32 %v618, 0.0
    %v623 = vmax.f32 %v619, 0.0
    %v624 = vmax.f32 %v620, 0.0
    %v625 = vmax.f32 %v621, 0.0
    %v626 = vpack.c.bf16 %v623, %v622
    %v627 = vpack.c.bf16 %v625, %v624
    %v628 = vld [vmem:[%s9] sm:$0xf]
    %v629 = vld [vmem:[%s9 + $0x4] sm:$0xf]
    %v630 = vld [vmem:[%s9 + $0x8] sm:$0xf]
    %v631 = vld [vmem:[%s9 + $0xc] sm:$0xf]
    %v632 = vld [vmem:[#allocation18] sm:$0x1]
    %v634 = vlaneseq
    %v635 = vshrl.u32 %v634, 7
    %v636 = vsub.s32 0, %v635
    %v637 = vrot.slane %v632, %v636
    %v643 = vunpack.c.l.b16 %v628
    %v644 = vunpack.c.l.b16 %v629
    %v645 = vunpack.c.l.b16 %v630
    %v646 = vunpack.c.l.b16 %v631
    %v647 = vpack.c.b16 %v644, %v643
    %v648 = vpack.c.b16 %v646, %v645
    %v652 = vsel %vm225, %v626, 0
    %v655 = vsel %vm225, %v627, 0
    %657 = vmatprep.subr.bf16.mxu0 0
    %658 = vmatpush1.bf16.msra.mxu0 %v647
    %659 = vmatprep.subr.bf16.mxu0 0
    %660 = vmatpush1.bf16.msra.mxu0 %v648
    %661 = vmatprep.subr.bf16.mxu0 0
    %662 = vmatpush1.bf16.msra.mxu0 0
    %663 = vmatprep.subr.bf16.mxu0 0
    %664 = vmatpush1.bf16.msra.mxu0 0
    %665 = vmatprep.subr.bf16.mxu0 0
    %666 = vmatpush1.bf16.msra.mxu0 0
    %667 = vmatprep.subr.bf16.mxu0 0
    %668 = vmatpush1.bf16.msra.mxu0 0
    %669 = vmatprep.subr.bf16.mxu0 0
    %670 = vmatpush1.bf16.msra.mxu0 0
    %671 = vmatprep.subr.bf16.mxu0 0
    %672 = vmatpush1.bf16.msra.mxu0 0
    %673 = vmatprep.subr.bf16.mxu0 0
    %674 = vmatpush1.bf16.msra.mxu0 0
    %675 = vmatprep.subr.bf16.mxu0 0
    %676 = vmatpush1.bf16.msra.mxu0 0
    %677 = vmatprep.subr.bf16.mxu0 0
    %678 = vmatpush1.bf16.msra.mxu0 0
    %679 = vmatprep.subr.bf16.mxu0 0
    %680 = vmatpush1.bf16.msra.mxu0 0
    %681 = vmatprep.subr.bf16.mxu0 0
    %682 = vmatpush1.bf16.msra.mxu0 0
    %683 = vmatprep.subr.bf16.mxu0 0
    %684 = vmatpush1.bf16.msra.mxu0 0
    %685 = vmatprep.subr.bf16.mxu0 0
    %686 = vmatpush1.bf16.msra.mxu0 0
    %687 = vmatprep.subr.bf16.mxu0 0
    %688 = vmatpush1.bf16.msra.mxu0 0
    %689 = vmatprep.mubr.bf16.mxu0 0
    %690 = vmatmul.mubr.bf16.gmra.mrb[0].mxu0 %v652
    %v691 = vpop.f32.mrb[0].mxu0
    %v692 = vadd.f32 %v637, %v691
    %v693 = vpop.f32.mrb[0].mxu0
    %v694 = vpop.f32.mrb[0].mxu0
    %v695 = vadd.f32 %v637, %v694
    %v696 = vpop.f32.mrb[0].mxu0
    %697 = vmatprep.mubr.bf16.mxu0 0
    %698 = vmatmul.mubr.bf16.gmra.mrb[0].mxu0 %v655
    %v699 = vpop.f32.mrb[0].mxu0
    %v700 = vadd.f32 %v637, %v699
    %v701 = vpop.f32.mrb[0].mxu0
    %v702 = vpop.f32.mrb[0].mxu0
    %v703 = vadd.f32 %v637, %v702
    %v704 = vpop.f32.mrb[0].mxu0
    %705 = vdwg.mxu0
    %v706 = vpack.c.bf16 %v695, %v692
    %v707 = vpack.c.bf16 %v703, %v700
    %710 = vrot.lane.b32.xlu0 %v706, 96
    %v711 = vpop.permute.xlu0 %710
    %712 = vrot.lane.b32.xlu0 %v707, 96
    %v713 = vpop.permute.xlu0 %712
    %v715 = vsel %vm225, %v706, 0
    %v718 = vsel %vm225, %v707, 0
    %v721 = vsel %vm225, %v711, 0
    %v724 = vsel %vm225, %v713, 0
    %726 = vmatprep.subr.bf16.mxu0 0
    %727 = vmatpush1.bf16.xpose.msra.mxu0 %v721
    %728 = vmatprep.subr.bf16.mxu0 0
    %729 = vmatpush1.bf16.xpose.msra.mxu0 %v724
    %730 = vmatprep.subr.bf16.mxu0 0
    %731 = vmatpush1.bf16.xpose.msra.mxu0 0
    %732 = vmatprep.subr.bf16.mxu0 0
    %733 = vmatpush1.bf16.xpose.msra.mxu0 0
    %734 = vmatprep.subr.bf16.mxu0 0
    %735 = vmatpush1.bf16.xpose.msra.mxu0 0
    %736 = vmatprep.subr.bf16.mxu0 0
    %737 = vmatpush1.bf16.xpose.msra.mxu0 0
    %738 = vmatprep.subr.bf16.mxu0 0
    %739 = vmatpush1.bf16.xpose.msra.mxu0 0
    %740 = vmatprep.subr.bf16.mxu0 0
    %741 = vmatpush1.bf16.xpose.msra.mxu0 0
    %742 = vmatprep.subr.bf16.mxu0 0
    %743 = vmatpush1.bf16.xpose.msra.mxu0 0
    %744 = vmatprep.subr.bf16.mxu0 0
    %745 = vmatpush1.bf16.xpose.msra.mxu0 0
    %746 = vmatprep.subr.bf16.mxu0 0
    %747 = vmatpush1.bf16.xpose.msra.mxu0 0
    %748 = vmatprep.subr.bf16.mxu0 0
    %749 = vmatpush1.bf16.xpose.msra.mxu0 0
    %750 = vmatprep.subr.bf16.mxu0 0
    %751 = vmatpush1.bf16.xpose.msra.mxu0 0
    %752 = vmatprep.subr.bf16.mxu0 0
    %753 = vmatpush1.bf16.xpose.msra.mxu0 0
    %754 = vmatprep.subr.bf16.mxu0 0
    %755 = vmatpush1.bf16.xpose.msra.mxu0 0
    %756 = vmatprep.subr.bf16.mxu0 0
    %757 = vmatpush1.bf16.xpose.msra.mxu0 0
    %758 = vmatprep.mubr.bf16.mxu0 0
    %759 = vmatmul.mubr.bf16.gmra.mrb[0].mxu0 %v715
    %v760 = vpop.f32.mrb[0].mxu0
    %v761 = vadd.f32 0.0, %v760
    %v762 = vpop.f32.mrb[0].mxu0
    %v763 = vpop.f32.mrb[0].mxu0
    %v764 = vadd.f32 0.0, %v763
    %v765 = vpop.f32.mrb[0].mxu0
    %766 = vmatprep.mubr.bf16.mxu0 0
    %767 = vmatmul.mubr.bf16.gmra.mrb[0].mxu0 %v718
    %v768 = vpop.f32.mrb[0].mxu0
    %v769 = vadd.f32 0.0, %v768
    %v770 = vpop.f32.mrb[0].mxu0
    %v771 = vpop.f32.mrb[0].mxu0
    %v772 = vadd.f32 0.0, %v771
    %v773 = vpop.f32.mrb[0].mxu0
    %774 = vdwg.mxu0
    %v775 = vsel %vm225, %v761, -inf
    %776 = vmax.xlane.f32.xlu0 %v775
    %v777 = vpop.xlane.xlu0 %776
    %v778 = vsel %vm225, %v764, -inf
    %779 = vmax.xlane.f32.xlu0 %v778
    %v780 = vpop.xlane.xlu0 %779
    %v781 = vsel %vm225, %v769, -inf
    %782 = vmax.xlane.f32.xlu0 %v781
    %v783 = vpop.xlane.xlu0 %782
    %v784 = vsel %vm225, %v772, -inf
    %785 = vmax.xlane.f32.xlu0 %v784
    %v786 = vpop.xlane.xlu0 %785
    %v787 = vsub.f32 %v761, %v777
    %v788 = vsub.f32 %v764, %v780
    %v789 = vsub.f32 %v769, %v783
    %v790 = vsub.f32 %v772, %v786
    %v791 = vmul.f32 %v787, 1.442695
    %v792 = vpow.pop %v791
    %v793 = vmul.f32 %v788, 1.442695
    %v794 = vpow.pop %v793
    %v795 = vmul.f32 %v789, 1.442695
    %v796 = vpow.pop %v795
    %v797 = vmul.f32 %v790, 1.442695
    %v798 = vpow.pop %v797
    %v799 = vsel %vm225, %v792, 0.0
    %800 = vadd.xlane.f32.xlu0 %v799
    %v801 = vpop.xlane.xlu0 %800
    %v802 = vsel %vm225, %v794, 0.0
    %803 = vadd.xlane.f32.xlu0 %v802
    %v804 = vpop.xlane.xlu0 %803
    %v805 = vsel %vm225, %v796, 0.0
    %806 = vadd.xlane.f32.xlu0 %v805
    %v807 = vpop.xlane.xlu0 %806
    %v808 = vsel %vm225, %v798, 0.0
    %809 = vadd.xlane.f32.xlu0 %v808
    %v810 = vpop.xlane.xlu0 %809
    %v811 = vrcp.pop %v801
    %v812 = vrcp.pop %v804
    %v813 = vrcp.pop %v807
    %v814 = vrcp.pop %v810
    %v815 = vmul.f32 %v792, %v811
    %v816 = vmul.f32 %v794, %v812
    %v817 = vmul.f32 %v796, %v813
    %v818 = vmul.f32 %v798, %v814
    %v819 = vpack.c.bf16 %v816, %v815
    %v820 = vpack.c.bf16 %v818, %v817
    %821 = vrot.lane.b32.xlu0 %v706, 64
    %v822 = vpop.permute.xlu0 %821
    %823 = vrot.lane.b32.xlu0 %v707, 64
    %v824 = vpop.permute.xlu0 %823
    %v828 = vsel %vm225, %v819, 0
    %v831 = vsel %vm225, %v820, 0
    %833 = vmatprep.subr.bf16.mxu0 0
    %834 = vmatpush1.bf16.msra.mxu0 %v822
    %835 = vmatprep.subr.bf16.mxu0 0
    %836 = vmatpush1.bf16.msra.mxu0 %v824
    %837 = vmatprep.subr.bf16.mxu0 0
    %838 = vmatpush1.bf16.msra.mxu0 0
    %839 = vmatprep.subr.bf16.mxu0 0
    %840 = vmatpush1.bf16.msra.mxu0 0
    %841 = vmatprep.subr.bf16.mxu0 0
    %842 = vmatpush1.bf16.msra.mxu0 0
    %843 = vmatprep.subr.bf16.mxu0 0
    %844 = vmatpush1.bf16.msra.mxu0 0
    %845 = vmatprep.subr.bf16.mxu0 0
    %846 = vmatpush1.bf16.msra.mxu0 0
    %847 = vmatprep.subr.bf16.mxu0 0
    %848 = vmatpush1.bf16.msra.mxu0 0
    %849 = vmatprep.subr.bf16.mxu0 0
    %850 = vmatpush1.bf16.msra.mxu0 0
    %851 = vmatprep.subr.bf16.mxu0 0
    %852 = vmatpush1.bf16.msra.mxu0 0
    %853 = vmatprep.subr.bf16.mxu0 0
    %854 = vmatpush1.bf16.msra.mxu0 0
    %855 = vmatprep.subr.bf16.mxu0 0
    %856 = vmatpush1.bf16.msra.mxu0 0
    %857 = vmatprep.subr.bf16.mxu0 0
    %858 = vmatpush1.bf16.msra.mxu0 0
    %859 = vmatprep.subr.bf16.mxu0 0
    %860 = vmatpush1.bf16.msra.mxu0 0
    %861 = vmatprep.subr.bf16.mxu0 0
    %862 = vmatpush1.bf16.msra.mxu0 0
    %863 = vmatprep.subr.bf16.mxu0 0
    %864 = vmatpush1.bf16.msra.mxu0 0
    %865 = vmatprep.mubr.bf16.mxu0 0
    %866 = vmatmul.mubr.bf16.gmra.mrb[0].mxu0 %v828
    %v867 = vpop.f32.mrb[0].mxu0
    %v868 = vadd.f32 0.0, %v867
    %v869 = vpop.f32.mrb[0].mxu0
    %v870 = vpop.f32.mrb[0].mxu0
    %v871 = vadd.f32 0.0, %v870
    %v872 = vpop.f32.mrb[0].mxu0
    %873 = vmatprep.mubr.bf16.mxu0 0
    %874 = vmatmul.mubr.bf16.gmra.mrb[0].mxu0 %v831
    %v875 = vpop.f32.mrb[0].mxu0
    %v876 = vadd.f32 0.0, %v875
    %v877 = vpop.f32.mrb[0].mxu0
    %v878 = vpop.f32.mrb[0].mxu0
    %v879 = vadd.f32 0.0, %v878
    %v880 = vpop.f32.mrb[0].mxu0
    %881 = vdwg.mxu0
    %882 = vst.msk [vmem:[#allocation2] sm:$0xff] %vm225, %v868
    %883 = vst.msk [vmem:[#allocation2 + $0x8] sm:$0xff] %vm225, %v871
    %884 = vst.msk [vmem:[#allocation2 + $0x10] sm:$0xff] %vm225, %v876
    %885 = vst.msk [vmem:[#allocation2 + $0x18] sm:$0xff] %vm225, %v879
    %s886 = sld [smem:[#allocation4]]
    %s887 = scalar_lea.vmem [#allocation2], %s886
    %v888 = vld [vmem:[%s887] sm:$0x1]
    %s889 = sld [smem:[#allocation4 + $0x1]]
    %s890 = scalar_lea.vmem [#allocation2], %s889
    %v891 = vld [vmem:[%s890] sm:$0x1]
    %s892 = sld [smem:[#allocation4 + $0x2]]
    %s893 = scalar_lea.vmem [#allocation2], %s892
    %v894 = vld [vmem:[%s893] sm:$0x1]
    %s895 = sld [smem:[#allocation4 + $0x3]]
    %s896 = scalar_lea.vmem [#allocation2], %s895
    %v897 = vld [vmem:[%s896] sm:$0x1]
    %v899 = vrot.slane %v891, 7
    %v902 = vrot.slane %v894, 6
    %v905 = vrot.slane %v897, 5
    %vm907 = vcmask 1040384
    %v908 = vsel %vm907, %v888, %v899
    %vm909 = vcmask 1041408
    %v910 = vsel %vm909, %v908, %v902
    %vm911 = vcmask 1042432
    %v912 = vsel %vm911, %v910, %v905
    %v913 = vpack.c.bf16 %v912, %v912
    %v914 = vld [vmem:[#allocation20] sm:$0xf]
    %v915 = vld [vmem:[#allocation20 + $0x4] sm:$0xf]
    %v916 = vld [vmem:[#allocation20 + $0x8] sm:$0xf]
    %v917 = vld [vmem:[#allocation20 + $0xc] sm:$0xf]
    %v918 = vld [vmem:[#allocation21] sm:$0x1]
    %v920 = vlaneseq
    %v921 = vshrl.u32 %v920, 7
    %v922 = vsub.s32 0, %v921
    %v923 = vrot.slane %v918, %v922
    %v929 = vunpack.c.l.b16 %v914
    %v930 = vunpack.c.l.b16 %v915
    %v931 = vunpack.c.l.b16 %v916
    %v932 = vunpack.c.l.b16 %v917
    %v933 = vpack.c.b16 %v930, %v929
    %v934 = vpack.c.b16 %v932, %v931
    %v938 = vsel %vm225, %v913, 0
    %940 = vmatprep.subr.bf16.mxu0 0
    %941 = vmatpush1.bf16.msra.mxu0 %v933
    %942 = vmatprep.subr.bf16.mxu0 0
    %943 = vmatpush1.bf16.msra.mxu0 %v934
    %944 = vmatprep.subr.bf16.mxu0 0
    %945 = vmatpush1.bf16.msra.mxu0 0
    %946 = vmatprep.subr.bf16.mxu0 0
    %947 = vmatpush1.bf16.msra.mxu0 0
    %948 = vmatprep.subr.bf16.mxu0 0
    %949 = vmatpush1.bf16.msra.mxu0 0
    %950 = vmatprep.subr.bf16.mxu0 0
    %951 = vmatpush1.bf16.msra.mxu0 0
    %952 = vmatprep.subr.bf16.mxu0 0
    %953 = vmatpush1.bf16.msra.mxu0 0
    %954 = vmatprep.subr.bf16.mxu0 0
    %955 = vmatpush1.bf16.msra.mxu0 0
    %956 = vmatprep.subr.bf16.mxu0 0
    %957 = vmatpush1.bf16.msra.mxu0 0
    %958 = vmatprep.subr.bf16.mxu0 0
    %959 = vmatpush1.bf16.msra.mxu0 0
    %960 = vmatprep.subr.bf16.mxu0 0
    %961 = vmatpush1.bf16.msra.mxu0 0
    %962 = vmatprep.subr.bf16.mxu0 0
    %963 = vmatpush1.bf16.msra.mxu0 0
    %964 = vmatprep.subr.bf16.mxu0 0
    %965 = vmatpush1.bf16.msra.mxu0 0
    %966 = vmatprep.subr.bf16.mxu0 0
    %967 = vmatpush1.bf16.msra.mxu0 0
    %968 = vmatprep.subr.bf16.mxu0 0
    %969 = vmatpush1.bf16.msra.mxu0 0
    %970 = vmatprep.subr.bf16.mxu0 0
    %971 = vmatpush1.bf16.msra.mxu0 0
    %972 = vmatprep.mubr.bf16.mxu0 0
    %973 = vmatmul.mubr.bf16.gmra.mrb[0].mxu0 %v938
    %v974 = vpop.f32.mrb[0].mxu0
    %v975 = vadd.f32 %v923, %v974
    %v976 = vpop.f32.mrb[0].mxu0
    %v977 = vpop.f32.mrb[0].mxu0
    %v978 = vpop.f32.mrb[0].mxu0
    %979 = vdwg.mxu0
    %v980 = vmax.f32 %v975, 0.0
    %v981 = vpack.c.bf16 %v980, %v980
    %v982 = vld [vmem:[%s13] sm:$0xf]
    %v983 = vld [vmem:[%s13 + $0x4] sm:$0xf]
    %v984 = vld [vmem:[%s13 + $0x8] sm:$0xf]
    %v985 = vld [vmem:[%s13 + $0xc] sm:$0xf]
    %v986 = vld [vmem:[%s14] sm:$0x1]
    %v988 = vlaneseq
    %v989 = vshrl.u32 %v988, 7
    %v990 = vsub.s32 0, %v989
    %v991 = vrot.slane %v986, %v990
    %v997 = vunpack.c.l.b16 %v982
    %v998 = vunpack.c.l.b16 %v983
    %v999 = vunpack.c.l.b16 %v984
    %v1000 = vunpack.c.l.b16 %v985
    %v1001 = vpack.c.b16 %v998, %v997
    %v1002 = vpack.c.b16 %v1000, %v999
    %v1006 = vsel %vm225, %v981, 0
    %1008 = vmatprep.subr.bf16.mxu0 0
    %1009 = vmatpush1.bf16.msra.mxu0 %v1001
    %1010 = vmatprep.subr.bf16.mxu0 0
    %1011 = vmatpush1.bf16.msra.mxu0 %v1002
    %1012 = vmatprep.subr.bf16.mxu0 0
    %1013 = vmatpush1.bf16.msra.mxu0 0
    %1014 = vmatprep.subr.bf16.mxu0 0
    %1015 = vmatpush1.bf16.msra.mxu0 0
    %1016 = vmatprep.subr.bf16.mxu0 0
    %1017 = vmatpush1.bf16.msra.mxu0 0
    %1018 = vmatprep.subr.bf16.mxu0 0
    %1019 = vmatpush1.bf16.msra.mxu0 0
    %1020 = vmatprep.subr.bf16.mxu0 0
    %1021 = vmatpush1.bf16.msra.mxu0 0
    %1022 = vmatprep.subr.bf16.mxu0 0
    %1023 = vmatpush1.bf16.msra.mxu0 0
    %1024 = vmatprep.subr.bf16.mxu0 0
    %1025 = vmatpush1.bf16.msra.mxu0 0
    %1026 = vmatprep.subr.bf16.mxu0 0
    %1027 = vmatpush1.bf16.msra.mxu0 0
    %1028 = vmatprep.subr.bf16.mxu0 0
    %1029 = vmatpush1.bf16.msra.mxu0 0
    %1030 = vmatprep.subr.bf16.mxu0 0
    %1031 = vmatpush1.bf16.msra.mxu0 0
    %1032 = vmatprep.subr.bf16.mxu0 0
    %1033 = vmatpush1.bf16.msra.mxu0 0
    %1034 = vmatprep.subr.bf16.mxu0 0
    %1035 = vmatpush1.bf16.msra.mxu0 0
    %1036 = vmatprep.subr.bf16.mxu0 0
    %1037 = vmatpush1.bf16.msra.mxu0 0
    %1038 = vmatprep.subr.bf16.mxu0 0
    %1039 = vmatpush1.bf16.msra.mxu0 0
    %1040 = vmatprep.mubr.bf16.mxu0 0
    %1041 = vmatmul.mubr.bf16.gmra.mrb[0].mxu0 %v1006
    %v1042 = vpop.f32.mrb[0].mxu0
    %v1043 = vadd.f32 %v991, %v1042
    %v1044 = vpop.f32.mrb[0].mxu0
    %v1045 = vpop.f32.mrb[0].mxu0
    %v1046 = vpop.f32.mrb[0].mxu0
    %1047 = vdwg.mxu0
    %v1048 = vmax.f32 %v1043, 0.0
    %v1049 = vld [vmem:[%s15] sm:$0x1]
    %v1050 = vpack.c.bf16 %v1048, %v1048
    %v1051 = vld [vmem:[#allocation5] sm:$0x1]
    %1053 = vset.pattern.permute.xlu0 0
    %1054 = vperm.xlu0 %1053, %v1051
    %v1055 = vpop.permute.xlu0 %1054
    %v1057 = vlaneseq
    %v1058 = vshrl.u32 %v1057, 7
    %v1059 = vsub.s32 0, %v1058
    %v1060 = vrot.slane %v1055, %v1059
    %vm1061 = vcmask 523264
    %v1063 = vsel %vm1061, %v1049, 0
    %v1066 = vsel %vm1061, %v1050, 0
    %1068 = vmatprep.subr.bf16.mxu0 0
    %1069 = vmatpush1.bf16.xpose.msra.mxu0 %v1066
    %1070 = vmatprep.subr.bf16.mxu0 0
    %1071 = vmatpush1.bf16.xpose.msra.mxu0 0
    %1072 = vmatprep.subr.bf16.mxu0 0
    %1073 = vmatpush1.bf16.xpose.msra.mxu0 0
    %1074 = vmatprep.subr.bf16.mxu0 0
    %1075 = vmatpush1.bf16.xpose.msra.mxu0 0
    %1076 = vmatprep.subr.bf16.mxu0 0
    %1077 = vmatpush1.bf16.xpose.msra.mxu0 0
    %1078 = vmatprep.subr.bf16.mxu0 0
    %1079 = vmatpush1.bf16.xpose.msra.mxu0 0
    %1080 = vmatprep.subr.bf16.mxu0 0
    %1081 = vmatpush1.bf16.xpose.msra.mxu0 0
    %1082 = vmatprep.subr.bf16.mxu0 0
    %1083 = vmatpush1.bf16.xpose.msra.mxu0 0
    %1084 = vmatprep.subr.bf16.mxu0 0
    %1085 = vmatpush1.bf16.xpose.msra.mxu0 0
    %1086 = vmatprep.subr.bf16.mxu0 0
    %1087 = vmatpush1.bf16.xpose.msra.mxu0 0
    %1088 = vmatprep.subr.bf16.mxu0 0
    %1089 = vmatpush1.bf16.xpose.msra.mxu0 0
    %1090 = vmatprep.subr.bf16.mxu0 0
    %1091 = vmatpush1.bf16.xpose.msra.mxu0 0
    %1092 = vmatprep.subr.bf16.mxu0 0
    %1093 = vmatpush1.bf16.xpose.msra.mxu0 0
    %1094 = vmatprep.subr.bf16.mxu0 0
    %1095 = vmatpush1.bf16.xpose.msra.mxu0 0
    %1096 = vmatprep.subr.bf16.mxu0 0
    %1097 = vmatpush1.bf16.xpose.msra.mxu0 0
    %1098 = vmatprep.subr.bf16.mxu0 0
    %1099 = vmatpush1.bf16.xpose.msra.mxu0 0
    %1100 = vmatprep.mubr.bf16.mxu0 0
    %1101 = vmatmul.mubr.bf16.gmra.mrb[0].mxu0 %v1063
    %v1102 = vpop.f32.mrb[0].mxu0
    %v1103 = vadd.f32 %v1060, %v1102
    %v1104 = vpop.f32.mrb[0].mxu0
    %v1105 = vpop.f32.mrb[0].mxu0
    %v1106 = vpop.f32.mrb[0].mxu0
    %1107 = vdwg.mxu0
    %v1108 = vxor.u32 %v1103, 2147483648
    %v1109 = vmul.f32 %v1108, 1.442695
    %v1110 = vpow.pop %v1109
    %v1111 = vadd.f32 %v1110, 1.0
    %v1112 = vrcp.pop %v1111
    %v1113 = vmul.f32 1.0, %v1112
    %vm1114 = vcmask 24576
    %1115 = vst.msk [vmem:[#allocation23] sm:$0x1] %vm1114, %v1113
    // Predicated region
    $region106: #{tpu_custom_call.1} parent=1 // pred_check
      _
    $region107: #{tpu_custom_call.1} parent=1 // pred_check_branch
      %1117 = sbr.rel (0) target = $region109
    $region108: #{tpu_custom_call.1} parent=1 // pred_region
      %s1119 = ssub.s32 16, 16
      %1120 = vsyncadd [#allocation8], %s1119
      %s1122 = sshll.u32 [#allocation23], 4
      %s1123 = int_to_ptr.vmem [resolvable:$true] %s1122
      %1125 = dma.vmem_to_hbm [thread:$0]  %s1123, 16, %s17, [#allocation8]
    $region109: #{tpu_custom_call.1} parent=1 // pred_fallthru
      _
    // Predicated region
    $region110: #{tpu_custom_call.1} parent=1 // pred_check
      _
    $region111: #{tpu_custom_call.1} parent=1 // pred_check_branch
      %1127 = sbr.rel (0) target = $region113
    $region112: #{tpu_custom_call.1} parent=1 // pred_region
      %1128 = dma.done [#allocation8], 16
    $region113: #{tpu_custom_call.1} parent=1 // pred_fallthru
      _
    %1129 = vsyncpa [#allocation7], 1
    %1130 = vsyncpa [#allocation10], 1
    %1131 = vsyncpa [#allocation13], 1
    %1132 = vsyncpa [#allocation16], 1
    %1133 = vsyncpa [#allocation19], 1
    %1134 = vsyncpa [#allocation22], 1
    %1135 = vsyncpa [#allocation8], 1

</llo_original>
